<compile_context>
chip_gen: v5e
topology: v5e:2x2
jax: 0.10.0
libtpu: 0.0.40
codegen_flags: <defaults>
</compile_context>

<pallas_src>
import functools

import numpy as np
import jax
import jax.numpy as jnp
from jax.experimental import pallas as pl
from jax.experimental.pallas import tpu as pltpu


# ----------------------------------------------------------------------------
# Fused kernel.
#   Grid: (batch, h_out_tiles)  -- ("parallel", "arbitrary")
#   Inputs: x (1,C,H,W) | folded conv weights/biases (SMEM scalars) |
#           A_h row-tile (TH_out, H) | A_w^T (W, W_out) (grid-invariant)
#   Output: lane-dense slab block (1, TH_out, K*W_out)
#   Scratch: (H, K*W_out) width-pass result, persistent across H_out tiles.
# ----------------------------------------------------------------------------
def _ra_fused_kernel(x_ref, wm_ref, bm_ref, wa_ref, ba_ref, wb_ref, bb_ref,
                     ah_ref, awt_ref, o_ref, tmp_ref):
    j = pl.program_id(1)

    C = x_ref.shape[1]
    H = x_ref.shape[2]
    W_out = awt_ref.shape[1]
    K = o_ref.shape[2] // W_out

    # ---- per-image work: 1x1 convs + combine + width-pass matmul ------------
    @pl.when(j == 0)
    def _():
        xs = [x_ref[0, c].astype(jnp.float32) for c in range(C)]   # (H, W) each

        pres = []
        for k in range(K):
            # Folded 1x1 convs as VPU weighted channel sums (SMEM scalars):
            #   mid = x.w_m + b_m
            #   A   = x.(w_l + w_m - 2 w_u) + (b_l + b_m - 2 b_u)
            #   B   = x.(w_l + w_u)         + (b_l + b_u)
            mid = xs[0] * wm_ref[0, k]
            amap = xs[0] * wa_ref[0, k]
            bmap = xs[0] * wb_ref[0, k]
            for c in range(1, C):
                mid = mid + xs[c] * wm_ref[c, k]
                amap = amap + xs[c] * wa_ref[c, k]
                bmap = bmap + xs[c] * wb_ref[c, k]
            mid = mid + bm_ref[k]
            amap = amap + ba_ref[k]
            bmap = bmap + bb_ref[k]
            # pre = A + sigmoid(mid) * B   (exact refactor of the module math)
            pres.append(amap + jax.nn.sigmoid(mid) * bmap)

        # One fat width-pass matmul for all K classes: (K*H, W) @ (W, W_out).
        pre_stack = jnp.concatenate(pres, axis=0)                  # (K*H, W)
        awt = awt_ref[...]
        tmp = jnp.dot(pre_stack.astype(awt.dtype), awt,
                      preferred_element_type=jnp.float32)          # (K*H, W_out)

        # Regroup column-wise into the persistent slab: (H, K*W_out).
        for k in range(K):
            tmp_ref[:, k * W_out:(k + 1) * W_out] = (
                tmp[k * H:(k + 1) * H, :].astype(tmp_ref.dtype))

    # ---- per-H_out-tile work: one lane-dense height-pass matmul + store -----
    out = jnp.dot(ah_ref[...], tmp_ref[...],
                  preferred_element_type=jnp.float32)     # (TH_out, K*W_out)
    o_ref[0] = out.astype(o_ref.dtype)


# ----------------------------------------------------------------------------
# Host-side helpers.
# ----------------------------------------------------------------------------
def interp_matrix_np(n_in, n_out):
    """Row-stochastic (n_out, n_in) bilinear matrix, align_corners=True."""
    if n_in == 1 or n_out == 1:
        a = np.zeros((n_out, n_in), np.float32)
        a[:, 0] = 1.0
        return a
    src = np.arange(n_out, dtype=np.float64) * (n_in - 1) / (n_out - 1)
    i0 = np.clip(np.floor(src).astype(np.int64), 0, n_in - 2)
    frac = (src - i0).astype(np.float32)
    rows = np.arange(n_out)
    a = np.zeros((n_out, n_in), np.float32)
    a[rows, i0] += 1.0 - frac
    a[rows, i0 + 1] += frac
    return a


def init_params(key, in_channels, n_classes):
    ks = jax.random.split(key, 6)
    bound = 1.0 / float(np.sqrt(in_channels))
    mk_w = lambda k: jax.random.uniform(
        k, (in_channels, n_classes), jnp.float32, -bound, bound)
    mk_b = lambda k: jax.random.uniform(
        k, (n_classes,), jnp.float32, -bound, bound)
    return dict(
        wu=mk_w(ks[0]), bu=mk_b(ks[1]),
        wm=mk_w(ks[2]), bm=mk_b(ks[3]),
        wl=mk_w(ks[4]), bl=mk_b(ks[5]),
    )


def _pick_h_tile(h_out, lane_cols, itemsize, budget_bytes=4 << 20):
    """Largest multiple-of-8 divisor of h_out whose output block fits budget
    (falls back to the full extent, which is always legal as a block dim)."""
    max_rows = max(8, budget_bytes // max(1, lane_cols * itemsize))
    if h_out <= max_rows:
        return h_out
    start = (min(h_out, max_rows) // 8) * 8
    for cand in range(start, 0, -8):
        if h_out % cand == 0:
            return cand
    return h_out


def _vmem_estimate_bytes(c, h, w, k, w_out, th_out, comp_isz, out_isz):
    f32 = 4
    x_b = c * h * w * f32
    ah_b = th_out * h * comp_isz
    awt_b = w * w_out * comp_isz
    out_b = th_out * k * w_out * out_isz
    scratch = h * k * w_out * comp_isz
    temps = ((c + 3) * h * w * f32          # channel planes + mid/A/B maps
             + k * h * w * f32              # stacked pre
             + k * h * w_out * f32          # width-pass result
             + th_out * k * w_out * f32)    # height-pass result
    return 2 * (x_b + ah_b + awt_b + out_b) + scratch + temps


# ----------------------------------------------------------------------------
# Wrapper.
# ----------------------------------------------------------------------------
@functools.partial(jax.jit,
                   static_argnames=("scale_factor", "out_dtype", "compute_dtype"))
def ra_forward(x_nchw, params, scale_factor=4,
               out_dtype=jnp.float32, compute_dtype=jnp.float32):
    b, c, h, w = x_nchw.shape
    k = params["wu"].shape[1]
    h_out, w_out = h * scale_factor, w * scale_factor
    kw_out = k * w_out

    # Bilinear interpolation matrices (host numpy constants).
    a_h = jnp.asarray(interp_matrix_np(h, h_out), dtype=compute_dtype)      # (H_out, H)
    a_wt = jnp.asarray(interp_matrix_np(w, w_out).T, dtype=compute_dtype)   # (W, W_out)

    # Fold the attention-combine algebra into the 1x1-conv weights (host side).
    wm, bm = params["wm"], params["bm"]
    wa = params["wl"] + params["wm"] - 2.0 * params["wu"]
    ba = params["bl"] + params["bm"] - 2.0 * params["bu"]
    wb = params["wl"] + params["wu"]
    bb = params["bl"] + params["bu"]

    out_isz = np.dtype(out_dtype).itemsize
    comp_isz = np.dtype(compute_dtype).itemsize
    th_out = _pick_h_tile(h_out, kw_out, max(out_isz, comp_isz))
    n_h_tiles = h_out // th_out

    est = _vmem_estimate_bytes(c, h, w, k, w_out, th_out, comp_isz, out_isz)
    vmem_limit = int(min(48 * 1024 * 1024, max(32 * 1024 * 1024, 2 * est)))

    smem = pl.BlockSpec(memory_space=pltpu.MemorySpace.SMEM)

    out_slab = pl.pallas_call(
        _ra_fused_kernel,
        out_shape=jax.ShapeDtypeStruct((b, h_out, kw_out), out_dtype),
        grid_spec=pltpu.PrefetchScalarGridSpec(
            num_scalar_prefetch=0,
            grid=(b, n_h_tiles),
            in_specs=[
                pl.BlockSpec((1, c, h, w), lambda i, j: (i, 0, 0, 0)),   # x
                smem, smem,                                              # wm, bm
                smem, smem,                                              # wa, ba
                smem, smem,                                              # wb, bb
                pl.BlockSpec((th_out, h), lambda i, j: (j, 0)),          # A_h tile
                # Grid-invariant (constant index_map -> DMA'd only once).
                pl.BlockSpec((w, w_out), lambda i, j: (0, 0)),           # A_w^T
            ],
            out_specs=pl.BlockSpec((1, th_out, kw_out),
                                   lambda i, j: (i, j, 0)),
            scratch_shapes=[pltpu.VMEM((h, kw_out), compute_dtype)],
        ),
        compiler_params=pltpu.CompilerParams(
            dimension_semantics=("parallel", "arbitrary"),
            vmem_limit_bytes=vmem_limit,
        ),
    )(x_nchw, wm, bm, wa, ba, wb, bb, a_h, a_wt)

    # Layout plumbing only: (B, H_out, K*W_out) -> (B, K, H_out, W_out).
    return out_slab.reshape(b, h_out, k, w_out).transpose(0, 2, 1, 3)


# ----------------------------------------------------------------------------
# Pure-JAX reference matching the PyTorch forward exactly (no fusion tricks).
# ----------------------------------------------------------------------------
def ra_reference(x_nchw, params, scale_factor=4):
    b, c, h, w = x_nchw.shape
    conv = lambda wgt, bias: (jnp.einsum("bchw,ck->bkhw", x_nchw, wgt)
                              + bias[None, :, None, None])
    up = conv(params["wu"], params["bu"])
    mid = conv(params["wm"], params["bm"])
    low = conv(params["wl"], params["bl"])

    a_h = jnp.asarray(interp_matrix_np(h, h * scale_factor))
    a_w = jnp.asarray(interp_matrix_np(w, w * scale_factor))
    interp = lambda img: jnp.einsum("oh,bkhw,pw->bkop", a_h, img, a_w)

    origin_out = interp(low)
    combined = mid - jax.nn.sigmoid(-mid) * up + jax.nn.sigmoid(mid) * low
    combined_out = interp(combined)
    rev_out = interp(-up)
    return origin_out + combined_out + rev_out


if __name__ == "__main__":
    key = jax.random.PRNGKey(0)
    k_x, k_p = jax.random.split(key)

    B, C, H, W = 2, 4, 16, 16
    N_CLASSES = 3
    SCALE = 4

    x = jax.random.normal(k_x, (B, C, H, W), dtype=jnp.float32)
    params = init_params(k_p, C, N_CLASSES)

    ref = ra_reference(x, params, scale_factor=SCALE)

    # Exact-semantics path: f32 compute + f32 output (matches the PyTorch module).
    out = jax.block_until_ready(ra_forward(x, params, scale_factor=SCALE))
    assert out.shape == (B, N_CLASSES, H * SCALE, W * SCALE), out.shape
    assert out.dtype == jnp.float32
    assert jnp.allclose(out, ref, atol=1e-4, rtol=1e-4), \
        float(jnp.max(jnp.abs(out - ref)))

    # Production path: bf16 MXU operands + bf16 HBM output (halves output bytes;
    # loose sanity check only, since bf16 changes numerics).
    out_bf16 = jax.block_until_ready(
        ra_forward(x, params, scale_factor=SCALE,
                   out_dtype=jnp.bfloat16, compute_dtype=jnp.bfloat16))
    assert out_bf16.dtype == jnp.bfloat16
    max_err = float(jnp.max(jnp.abs(out_bf16.astype(jnp.float32) - ref)))
    max_ref = float(jnp.max(jnp.abs(ref)))
    assert max_err <= 0.05 * (1.0 + max_ref), max_err

    print("KERNEL_OK")
</pallas_src>

<mosaic_0001>
module attributes {stable_mosaic.version = 11 : i64} {
  func.func @_ra_fused_kernel(%arg0: i32, %arg1: i32, %arg2: memref<1x4x16x16xf32, #tpu.memory_space<vmem>>, %arg3: memref<4x3xf32, #tpu.memory_space<smem>>, %arg4: memref<3xf32, #tpu.memory_space<smem>>, %arg5: memref<4x3xf32, #tpu.memory_space<smem>>, %arg6: memref<3xf32, #tpu.memory_space<smem>>, %arg7: memref<4x3xf32, #tpu.memory_space<smem>>, %arg8: memref<3xf32, #tpu.memory_space<smem>>, %arg9: memref<64x16xf32, #tpu.memory_space<vmem>>, %arg10: memref<16x64xf32, #tpu.memory_space<vmem>>, %arg11: memref<1x64x192xf32, #tpu.memory_space<vmem>>, %arg12: memref<16x192xf32, #tpu.memory_space<vmem>>) attributes {dimension_semantics = [#tpu.dimension_semantics<parallel>, #tpu.dimension_semantics<arbitrary>], iteration_bounds = array<i64: 2, 1>, scalar_prefetch = 0 : i64, scratch_operands = 1 : i64, tpu.core_type = #tpu.core_type<tc>, window_params = [{transform_indices = @transform_0, window_bounds = array<i64: 1, 4, 16, 16>}, {transform_indices = @transform_1, window_bounds = array<i64: 4, 3>}, {transform_indices = @transform_2, window_bounds = array<i64: 3>}, {transform_indices = @transform_3, window_bounds = array<i64: 4, 3>}, {transform_indices = @transform_4, window_bounds = array<i64: 3>}, {transform_indices = @transform_5, window_bounds = array<i64: 4, 3>}, {transform_indices = @transform_6, window_bounds = array<i64: 3>}, {transform_indices = @transform_7, window_bounds = array<i64: 64, 16>}, {pipeline_mode = #tpu.pipeline_mode<synchronous>, transform_indices = @transform_8, window_bounds = array<i64: 16, 64>}, {transform_indices = @transform_9, window_bounds = array<i64: 1, 64, 192>}]} {
    %c0_i32 = arith.constant 0 : i32
    %0 = arith.cmpi eq, %arg1, %c0_i32 : i32
    %1 = arith.extui %0 : i1 to i32
    %c0_i32_0 = arith.constant 0 : i32
    %2 = arith.cmpi ne, %1, %c0_i32_0 : i32
    scf.if %2 {
      %c0_7 = arith.constant 0 : index
      %c0_8 = arith.constant 0 : index
      %c0_9 = arith.constant 0 : index
      %c0_10 = arith.constant 0 : index
      %9 = vector.load %arg2[%c0_7, %c0_8, %c0_9, %c0_10] : memref<1x4x16x16xf32, #tpu.memory_space<vmem>>, vector<1x1x16x16xf32>
      %10 = vector.shape_cast %9 : vector<1x1x16x16xf32> to vector<16x16xf32>
      %c0_11 = arith.constant 0 : index
      %c1 = arith.constant 1 : index
      %c0_12 = arith.constant 0 : index
      %c0_13 = arith.constant 0 : index
      %11 = vector.load %arg2[%c0_11, %c1, %c0_12, %c0_13] : memref<1x4x16x16xf32, #tpu.memory_space<vmem>>, vector<1x1x16x16xf32>
      %12 = vector.shape_cast %11 : vector<1x1x16x16xf32> to vector<16x16xf32>
      %c0_14 = arith.constant 0 : index
      %c2 = arith.constant 2 : index
      %c0_15 = arith.constant 0 : index
      %c0_16 = arith.constant 0 : index
      %13 = vector.load %arg2[%c0_14, %c2, %c0_15, %c0_16] : memref<1x4x16x16xf32, #tpu.memory_space<vmem>>, vector<1x1x16x16xf32>
      %14 = vector.shape_cast %13 : vector<1x1x16x16xf32> to vector<16x16xf32>
      %c0_17 = arith.constant 0 : index
      %c3 = arith.constant 3 : index
      %c0_18 = arith.constant 0 : index
      %c0_19 = arith.constant 0 : index
      %15 = vector.load %arg2[%c0_17, %c3, %c0_18, %c0_19] : memref<1x4x16x16xf32, #tpu.memory_space<vmem>>, vector<1x1x16x16xf32>
      %16 = vector.shape_cast %15 : vector<1x1x16x16xf32> to vector<16x16xf32>
      %c0_20 = arith.constant 0 : index
      %c0_21 = arith.constant 0 : index
      %17 = memref.load %arg3[%c0_20, %c0_21] : memref<4x3xf32, #tpu.memory_space<smem>>
      %18 = vector.broadcast %17 : f32 to vector<16x16xf32>
      %19 = arith.mulf %10, %18 : vector<16x16xf32>
      %c0_22 = arith.constant 0 : index
      %c0_23 = arith.constant 0 : index
      %20 = memref.load %arg5[%c0_22, %c0_23] : memref<4x3xf32, #tpu.memory_space<smem>>
      %21 = vector.broadcast %20 : f32 to vector<16x16xf32>
      %22 = arith.mulf %10, %21 : vector<16x16xf32>
      %c0_24 = arith.constant 0 : index
      %c0_25 = arith.constant 0 : index
      %23 = memref.load %arg7[%c0_24, %c0_25] : memref<4x3xf32, #tpu.memory_space<smem>>
      %24 = vector.broadcast %23 : f32 to vector<16x16xf32>
      %25 = arith.mulf %10, %24 : vector<16x16xf32>
      %c1_26 = arith.constant 1 : index
      %c0_27 = arith.constant 0 : index
      %26 = memref.load %arg3[%c1_26, %c0_27] : memref<4x3xf32, #tpu.memory_space<smem>>
      %27 = vector.broadcast %26 : f32 to vector<16x16xf32>
      %28 = arith.mulf %12, %27 : vector<16x16xf32>
      %29 = arith.addf %19, %28 : vector<16x16xf32>
      %c1_28 = arith.constant 1 : index
      %c0_29 = arith.constant 0 : index
      %30 = memref.load %arg5[%c1_28, %c0_29] : memref<4x3xf32, #tpu.memory_space<smem>>
      %31 = vector.broadcast %30 : f32 to vector<16x16xf32>
      %32 = arith.mulf %12, %31 : vector<16x16xf32>
      %33 = arith.addf %22, %32 : vector<16x16xf32>
      %c1_30 = arith.constant 1 : index
      %c0_31 = arith.constant 0 : index
      %34 = memref.load %arg7[%c1_30, %c0_31] : memref<4x3xf32, #tpu.memory_space<smem>>
      %35 = vector.broadcast %34 : f32 to vector<16x16xf32>
      %36 = arith.mulf %12, %35 : vector<16x16xf32>
      %37 = arith.addf %25, %36 : vector<16x16xf32>
      %c2_32 = arith.constant 2 : index
      %c0_33 = arith.constant 0 : index
      %38 = memref.load %arg3[%c2_32, %c0_33] : memref<4x3xf32, #tpu.memory_space<smem>>
      %39 = vector.broadcast %38 : f32 to vector<16x16xf32>
      %40 = arith.mulf %14, %39 : vector<16x16xf32>
      %41 = arith.addf %29, %40 : vector<16x16xf32>
      %c2_34 = arith.constant 2 : index
      %c0_35 = arith.constant 0 : index
      %42 = memref.load %arg5[%c2_34, %c0_35] : memref<4x3xf32, #tpu.memory_space<smem>>
      %43 = vector.broadcast %42 : f32 to vector<16x16xf32>
      %44 = arith.mulf %14, %43 : vector<16x16xf32>
      %45 = arith.addf %33, %44 : vector<16x16xf32>
      %c2_36 = arith.constant 2 : index
      %c0_37 = arith.constant 0 : index
      %46 = memref.load %arg7[%c2_36, %c0_37] : memref<4x3xf32, #tpu.memory_space<smem>>
      %47 = vector.broadcast %46 : f32 to vector<16x16xf32>
      %48 = arith.mulf %14, %47 : vector<16x16xf32>
      %49 = arith.addf %37, %48 : vector<16x16xf32>
      %c3_38 = arith.constant 3 : index
      %c0_39 = arith.constant 0 : index
      %50 = memref.load %arg3[%c3_38, %c0_39] : memref<4x3xf32, #tpu.memory_space<smem>>
      %51 = vector.broadcast %50 : f32 to vector<16x16xf32>
      %52 = arith.mulf %16, %51 : vector<16x16xf32>
      %53 = arith.addf %41, %52 : vector<16x16xf32>
      %c3_40 = arith.constant 3 : index
      %c0_41 = arith.constant 0 : index
      %54 = memref.load %arg5[%c3_40, %c0_41] : memref<4x3xf32, #tpu.memory_space<smem>>
      %55 = vector.broadcast %54 : f32 to vector<16x16xf32>
      %56 = arith.mulf %16, %55 : vector<16x16xf32>
      %57 = arith.addf %45, %56 : vector<16x16xf32>
      %c3_42 = arith.constant 3 : index
      %c0_43 = arith.constant 0 : index
      %58 = memref.load %arg7[%c3_42, %c0_43] : memref<4x3xf32, #tpu.memory_space<smem>>
      %59 = vector.broadcast %58 : f32 to vector<16x16xf32>
      %60 = arith.mulf %16, %59 : vector<16x16xf32>
      %61 = arith.addf %49, %60 : vector<16x16xf32>
      %c0_44 = arith.constant 0 : index
      %62 = memref.load %arg4[%c0_44] : memref<3xf32, #tpu.memory_space<smem>>
      %63 = vector.broadcast %62 : f32 to vector<16x16xf32>
      %64 = arith.addf %53, %63 : vector<16x16xf32>
      %c0_45 = arith.constant 0 : index
      %65 = memref.load %arg6[%c0_45] : memref<3xf32, #tpu.memory_space<smem>>
      %66 = vector.broadcast %65 : f32 to vector<16x16xf32>
      %67 = arith.addf %57, %66 : vector<16x16xf32>
      %c0_46 = arith.constant 0 : index
      %68 = memref.load %arg8[%c0_46] : memref<3xf32, #tpu.memory_space<smem>>
      %69 = vector.broadcast %68 : f32 to vector<16x16xf32>
      %70 = arith.addf %61, %69 : vector<16x16xf32>
      %71 = arith.negf %64 : vector<16x16xf32>
      %72 = math.exp %71 : vector<16x16xf32>
      %cst_47 = arith.constant 1.000000e+00 : f32
      %73 = vector.broadcast %cst_47 : f32 to vector<16x16xf32>
      %74 = arith.addf %73, %72 : vector<16x16xf32>
      %75 = arith.divf %73, %74 : vector<16x16xf32>
      %76 = arith.mulf %75, %70 : vector<16x16xf32>
      %77 = arith.addf %67, %76 : vector<16x16xf32>
      %c0_48 = arith.constant 0 : index
      %c1_49 = arith.constant 1 : index
      %78 = memref.load %arg3[%c0_48, %c1_49] : memref<4x3xf32, #tpu.memory_space<smem>>
      %79 = vector.broadcast %78 : f32 to vector<16x16xf32>
      %80 = arith.mulf %10, %79 : vector<16x16xf32>
      %c0_50 = arith.constant 0 : index
      %c1_51 = arith.constant 1 : index
      %81 = memref.load %arg5[%c0_50, %c1_51] : memref<4x3xf32, #tpu.memory_space<smem>>
      %82 = vector.broadcast %81 : f32 to vector<16x16xf32>
      %83 = arith.mulf %10, %82 : vector<16x16xf32>
      %c0_52 = arith.constant 0 : index
      %c1_53 = arith.constant 1 : index
      %84 = memref.load %arg7[%c0_52, %c1_53] : memref<4x3xf32, #tpu.memory_space<smem>>
      %85 = vector.broadcast %84 : f32 to vector<16x16xf32>
      %86 = arith.mulf %10, %85 : vector<16x16xf32>
      %c1_54 = arith.constant 1 : index
      %c1_55 = arith.constant 1 : index
      %87 = memref.load %arg3[%c1_54, %c1_55] : memref<4x3xf32, #tpu.memory_space<smem>>
      %88 = vector.broadcast %87 : f32 to vector<16x16xf32>
      %89 = arith.mulf %12, %88 : vector<16x16xf32>
      %90 = arith.addf %80, %89 : vector<16x16xf32>
      %c1_56 = arith.constant 1 : index
      %c1_57 = arith.constant 1 : index
      %91 = memref.load %arg5[%c1_56, %c1_57] : memref<4x3xf32, #tpu.memory_space<smem>>
      %92 = vector.broadcast %91 : f32 to vector<16x16xf32>
      %93 = arith.mulf %12, %92 : vector<16x16xf32>
      %94 = arith.addf %83, %93 : vector<16x16xf32>
      %c1_58 = arith.constant 1 : index
      %c1_59 = arith.constant 1 : index
      %95 = memref.load %arg7[%c1_58, %c1_59] : memref<4x3xf32, #tpu.memory_space<smem>>
      %96 = vector.broadcast %95 : f32 to vector<16x16xf32>
      %97 = arith.mulf %12, %96 : vector<16x16xf32>
      %98 = arith.addf %86, %97 : vector<16x16xf32>
      %c2_60 = arith.constant 2 : index
      %c1_61 = arith.constant 1 : index
      %99 = memref.load %arg3[%c2_60, %c1_61] : memref<4x3xf32, #tpu.memory_space<smem>>
      %100 = vector.broadcast %99 : f32 to vector<16x16xf32>
      %101 = arith.mulf %14, %100 : vector<16x16xf32>
      %102 = arith.addf %90, %101 : vector<16x16xf32>
      %c2_62 = arith.constant 2 : index
      %c1_63 = arith.constant 1 : index
      %103 = memref.load %arg5[%c2_62, %c1_63] : memref<4x3xf32, #tpu.memory_space<smem>>
      %104 = vector.broadcast %103 : f32 to vector<16x16xf32>
      %105 = arith.mulf %14, %104 : vector<16x16xf32>
      %106 = arith.addf %94, %105 : vector<16x16xf32>
      %c2_64 = arith.constant 2 : index
      %c1_65 = arith.constant 1 : index
      %107 = memref.load %arg7[%c2_64, %c1_65] : memref<4x3xf32, #tpu.memory_space<smem>>
      %108 = vector.broadcast %107 : f32 to vector<16x16xf32>
      %109 = arith.mulf %14, %108 : vector<16x16xf32>
      %110 = arith.addf %98, %109 : vector<16x16xf32>
      %c3_66 = arith.constant 3 : index
      %c1_67 = arith.constant 1 : index
      %111 = memref.load %arg3[%c3_66, %c1_67] : memref<4x3xf32, #tpu.memory_space<smem>>
      %112 = vector.broadcast %111 : f32 to vector<16x16xf32>
      %113 = arith.mulf %16, %112 : vector<16x16xf32>
      %114 = arith.addf %102, %113 : vector<16x16xf32>
      %c3_68 = arith.constant 3 : index
      %c1_69 = arith.constant 1 : index
      %115 = memref.load %arg5[%c3_68, %c1_69] : memref<4x3xf32, #tpu.memory_space<smem>>
      %116 = vector.broadcast %115 : f32 to vector<16x16xf32>
      %117 = arith.mulf %16, %116 : vector<16x16xf32>
      %118 = arith.addf %106, %117 : vector<16x16xf32>
      %c3_70 = arith.constant 3 : index
      %c1_71 = arith.constant 1 : index
      %119 = memref.load %arg7[%c3_70, %c1_71] : memref<4x3xf32, #tpu.memory_space<smem>>
      %120 = vector.broadcast %119 : f32 to vector<16x16xf32>
      %121 = arith.mulf %16, %120 : vector<16x16xf32>
      %122 = arith.addf %110, %121 : vector<16x16xf32>
      %c1_72 = arith.constant 1 : index
      %123 = memref.load %arg4[%c1_72] : memref<3xf32, #tpu.memory_space<smem>>
      %124 = vector.broadcast %123 : f32 to vector<16x16xf32>
      %125 = arith.addf %114, %124 : vector<16x16xf32>
      %c1_73 = arith.constant 1 : index
      %126 = memref.load %arg6[%c1_73] : memref<3xf32, #tpu.memory_space<smem>>
      %127 = vector.broadcast %126 : f32 to vector<16x16xf32>
      %128 = arith.addf %118, %127 : vector<16x16xf32>
      %c1_74 = arith.constant 1 : index
      %129 = memref.load %arg8[%c1_74] : memref<3xf32, #tpu.memory_space<smem>>
      %130 = vector.broadcast %129 : f32 to vector<16x16xf32>
      %131 = arith.addf %122, %130 : vector<16x16xf32>
      %132 = arith.negf %125 : vector<16x16xf32>
      %133 = math.exp %132 : vector<16x16xf32>
      %cst_75 = arith.constant 1.000000e+00 : f32
      %134 = vector.broadcast %cst_75 : f32 to vector<16x16xf32>
      %135 = arith.addf %134, %133 : vector<16x16xf32>
      %136 = arith.divf %134, %135 : vector<16x16xf32>
      %137 = arith.mulf %136, %131 : vector<16x16xf32>
      %138 = arith.addf %128, %137 : vector<16x16xf32>
      %c0_76 = arith.constant 0 : index
      %c2_77 = arith.constant 2 : index
      %139 = memref.load %arg3[%c0_76, %c2_77] : memref<4x3xf32, #tpu.memory_space<smem>>
      %140 = vector.broadcast %139 : f32 to vector<16x16xf32>
      %141 = arith.mulf %10, %140 : vector<16x16xf32>
      %c0_78 = arith.constant 0 : index
      %c2_79 = arith.constant 2 : index
      %142 = memref.load %arg5[%c0_78, %c2_79] : memref<4x3xf32, #tpu.memory_space<smem>>
      %143 = vector.broadcast %142 : f32 to vector<16x16xf32>
      %144 = arith.mulf %10, %143 : vector<16x16xf32>
      %c0_80 = arith.constant 0 : index
      %c2_81 = arith.constant 2 : index
      %145 = memref.load %arg7[%c0_80, %c2_81] : memref<4x3xf32, #tpu.memory_space<smem>>
      %146 = vector.broadcast %145 : f32 to vector<16x16xf32>
      %147 = arith.mulf %10, %146 : vector<16x16xf32>
      %c1_82 = arith.constant 1 : index
      %c2_83 = arith.constant 2 : index
      %148 = memref.load %arg3[%c1_82, %c2_83] : memref<4x3xf32, #tpu.memory_space<smem>>
      %149 = vector.broadcast %148 : f32 to vector<16x16xf32>
      %150 = arith.mulf %12, %149 : vector<16x16xf32>
      %151 = arith.addf %141, %150 : vector<16x16xf32>
      %c1_84 = arith.constant 1 : index
      %c2_85 = arith.constant 2 : index
      %152 = memref.load %arg5[%c1_84, %c2_85] : memref<4x3xf32, #tpu.memory_space<smem>>
      %153 = vector.broadcast %152 : f32 to vector<16x16xf32>
      %154 = arith.mulf %12, %153 : vector<16x16xf32>
      %155 = arith.addf %144, %154 : vector<16x16xf32>
      %c1_86 = arith.constant 1 : index
      %c2_87 = arith.constant 2 : index
      %156 = memref.load %arg7[%c1_86, %c2_87] : memref<4x3xf32, #tpu.memory_space<smem>>
      %157 = vector.broadcast %156 : f32 to vector<16x16xf32>
      %158 = arith.mulf %12, %157 : vector<16x16xf32>
      %159 = arith.addf %147, %158 : vector<16x16xf32>
      %c2_88 = arith.constant 2 : index
      %c2_89 = arith.constant 2 : index
      %160 = memref.load %arg3[%c2_88, %c2_89] : memref<4x3xf32, #tpu.memory_space<smem>>
      %161 = vector.broadcast %160 : f32 to vector<16x16xf32>
      %162 = arith.mulf %14, %161 : vector<16x16xf32>
      %163 = arith.addf %151, %162 : vector<16x16xf32>
      %c2_90 = arith.constant 2 : index
      %c2_91 = arith.constant 2 : index
      %164 = memref.load %arg5[%c2_90, %c2_91] : memref<4x3xf32, #tpu.memory_space<smem>>
      %165 = vector.broadcast %164 : f32 to vector<16x16xf32>
      %166 = arith.mulf %14, %165 : vector<16x16xf32>
      %167 = arith.addf %155, %166 : vector<16x16xf32>
      %c2_92 = arith.constant 2 : index
      %c2_93 = arith.constant 2 : index
      %168 = memref.load %arg7[%c2_92, %c2_93] : memref<4x3xf32, #tpu.memory_space<smem>>
      %169 = vector.broadcast %168 : f32 to vector<16x16xf32>
      %170 = arith.mulf %14, %169 : vector<16x16xf32>
      %171 = arith.addf %159, %170 : vector<16x16xf32>
      %c3_94 = arith.constant 3 : index
      %c2_95 = arith.constant 2 : index
      %172 = memref.load %arg3[%c3_94, %c2_95] : memref<4x3xf32, #tpu.memory_space<smem>>
      %173 = vector.broadcast %172 : f32 to vector<16x16xf32>
      %174 = arith.mulf %16, %173 : vector<16x16xf32>
      %175 = arith.addf %163, %174 : vector<16x16xf32>
      %c3_96 = arith.constant 3 : index
      %c2_97 = arith.constant 2 : index
      %176 = memref.load %arg5[%c3_96, %c2_97] : memref<4x3xf32, #tpu.memory_space<smem>>
      %177 = vector.broadcast %176 : f32 to vector<16x16xf32>
      %178 = arith.mulf %16, %177 : vector<16x16xf32>
      %179 = arith.addf %167, %178 : vector<16x16xf32>
      %c3_98 = arith.constant 3 : index
      %c2_99 = arith.constant 2 : index
      %180 = memref.load %arg7[%c3_98, %c2_99] : memref<4x3xf32, #tpu.memory_space<smem>>
      %181 = vector.broadcast %180 : f32 to vector<16x16xf32>
      %182 = arith.mulf %16, %181 : vector<16x16xf32>
      %183 = arith.addf %171, %182 : vector<16x16xf32>
      %c2_100 = arith.constant 2 : index
      %184 = memref.load %arg4[%c2_100] : memref<3xf32, #tpu.memory_space<smem>>
      %185 = vector.broadcast %184 : f32 to vector<16x16xf32>
      %186 = arith.addf %175, %185 : vector<16x16xf32>
      %c2_101 = arith.constant 2 : index
      %187 = memref.load %arg6[%c2_101] : memref<3xf32, #tpu.memory_space<smem>>
      %188 = vector.broadcast %187 : f32 to vector<16x16xf32>
      %189 = arith.addf %179, %188 : vector<16x16xf32>
      %c2_102 = arith.constant 2 : index
      %190 = memref.load %arg8[%c2_102] : memref<3xf32, #tpu.memory_space<smem>>
      %191 = vector.broadcast %190 : f32 to vector<16x16xf32>
      %192 = arith.addf %183, %191 : vector<16x16xf32>
      %193 = arith.negf %186 : vector<16x16xf32>
      %194 = math.exp %193 : vector<16x16xf32>
      %cst_103 = arith.constant 1.000000e+00 : f32
      %195 = vector.broadcast %cst_103 : f32 to vector<16x16xf32>
      %196 = arith.addf %195, %194 : vector<16x16xf32>
      %197 = arith.divf %195, %196 : vector<16x16xf32>
      %198 = arith.mulf %197, %192 : vector<16x16xf32>
      %199 = arith.addf %189, %198 : vector<16x16xf32>
      %200 = tpu.concatenate %77, %138, %199 in 0 : vector<16x16xf32>, vector<16x16xf32>, vector<16x16xf32> -> vector<48x16xf32>
      %c0_104 = arith.constant 0 : index
      %c0_105 = arith.constant 0 : index
      %201 = vector.load %arg10[%c0_104, %c0_105] : memref<16x64xf32, #tpu.memory_space<vmem>>, vector<16x64xf32>
      %cst_106 = arith.constant dense<0.000000e+00> : vector<48x64xf32>
      %202 = tpu.matmul %200, %201, %cst_106 {dimension_numbers = #tpu.dot_dimension_numbers<[1], [0], [0], [1], [0, 0, 1, 1], [], []>} : vector<48x16xf32>, vector<16x64xf32>, vector<48x64xf32> -> vector<48x64xf32>
      %203 = vector.extract_strided_slice %202 {offsets = [0, 0], sizes = [16, 64], strides = [1, 1]} : vector<48x64xf32> to vector<16x64xf32>
      %c0_107 = arith.constant 0 : index
      %c0_108 = arith.constant 0 : index
      %204 = vector.load %arg12[%c0_107, %c0_108] : memref<16x192xf32, #tpu.memory_space<vmem>>, vector<16x64xf32>
      tpu.vector_store %arg12[%c0_107, %c0_108], %203 {strides = array<i32>} : memref<16x192xf32, #tpu.memory_space<vmem>>, vector<16x64xf32>,
      %205 = vector.extract_strided_slice %202 {offsets = [16, 0], sizes = [16, 64], strides = [1, 1]} : vector<48x64xf32> to vector<16x64xf32>
      %c0_109 = arith.constant 0 : index
      %c64 = arith.constant 64 : index
      %206 = vector.load %arg12[%c0_109, %c64] : memref<16x192xf32, #tpu.memory_space<vmem>>, vector<16x64xf32>
      tpu.vector_store %arg12[%c0_109, %c64], %205 {strides = array<i32>} : memref<16x192xf32, #tpu.memory_space<vmem>>, vector<16x64xf32>,
      %207 = vector.extract_strided_slice %202 {offsets = [32, 0], sizes = [16, 64], strides = [1, 1]} : vector<48x64xf32> to vector<16x64xf32>
      %c0_110 = arith.constant 0 : index
      %c128 = arith.constant 128 : index
      %208 = vector.load %arg12[%c0_110, %c128] : memref<16x192xf32, #tpu.memory_space<vmem>>, vector<16x64xf32>
      tpu.vector_store %arg12[%c0_110, %c128], %207 {strides = array<i32>} : memref<16x192xf32, #tpu.memory_space<vmem>>, vector<16x64xf32>,
    } else {
    }
    %c0 = arith.constant 0 : index
    %c0_1 = arith.constant 0 : index
    %3 = vector.load %arg9[%c0, %c0_1] : memref<64x16xf32, #tpu.memory_space<vmem>>, vector<64x16xf32>
    %c0_2 = arith.constant 0 : index
    %c0_3 = arith.constant 0 : index
    %4 = vector.load %arg12[%c0_2, %c0_3] : memref<16x192xf32, #tpu.memory_space<vmem>>, vector<16x192xf32>
    %cst = arith.constant dense<0.000000e+00> : vector<64x192xf32>
    %5 = tpu.matmul %3, %4, %cst {dimension_numbers = #tpu.dot_dimension_numbers<[1], [0], [0], [1], [0, 0, 1, 1], [], []>} : vector<64x16xf32>, vector<16x192xf32>, vector<64x192xf32> -> vector<64x192xf32>
    %c0_4 = arith.constant 0 : index
    %c0_5 = arith.constant 0 : index
    %c0_6 = arith.constant 0 : index
    %6 = vector.load %arg11[%c0_4, %c0_5, %c0_6] : memref<1x64x192xf32, #tpu.memory_space<vmem>>, vector<1x64x192xf32>
    %7 = vector.shape_cast %6 : vector<1x64x192xf32> to vector<64x192xf32>
    %8 = vector.shape_cast %5 : vector<64x192xf32> to vector<1x64x192xf32>
    tpu.vector_store %arg11[%c0_4, %c0_5, %c0_6], %8 {strides = array<i32>} : memref<1x64x192xf32, #tpu.memory_space<vmem>>, vector<1x64x192xf32>,
    return
  }
  func.func @transform_0(%arg0: i32, %arg1: i32) -> (i32, i32, i32, i32) {
    %c0_i32 = arith.constant 0 : i32
    %c0_i32_0 = arith.constant 0 : i32
    %c0_i32_1 = arith.constant 0 : i32
    %c0_i32_2 = arith.constant 0 : i32
    return %arg0, %c0_i32, %c0_i32_0, %c0_i32_1 : i32, i32, i32, i32
  }
  func.func @transform_1(%arg0: i32, %arg1: i32) -> (i32, i32) {
    %c0_i32 = arith.constant 0 : i32
    %c0_i32_0 = arith.constant 0 : i32
    %c0_i32_1 = arith.constant 0 : i32
    return %c0_i32, %c0_i32_0 : i32, i32
  }
  func.func @transform_2(%arg0: i32, %arg1: i32) -> i32 {
    %c0_i32 = arith.constant 0 : i32
    %c0_i32_0 = arith.constant 0 : i32
    return %c0_i32 : i32
  }
  func.func @transform_3(%arg0: i32, %arg1: i32) -> (i32, i32) {
    %c0_i32 = arith.constant 0 : i32
    %c0_i32_0 = arith.constant 0 : i32
    %c0_i32_1 = arith.constant 0 : i32
    return %c0_i32, %c0_i32_0 : i32, i32
  }
  func.func @transform_4(%arg0: i32, %arg1: i32) -> i32 {
    %c0_i32 = arith.constant 0 : i32
    %c0_i32_0 = arith.constant 0 : i32
    return %c0_i32 : i32
  }
  func.func @transform_5(%arg0: i32, %arg1: i32) -> (i32, i32) {
    %c0_i32 = arith.constant 0 : i32
    %c0_i32_0 = arith.constant 0 : i32
    %c0_i32_1 = arith.constant 0 : i32
    return %c0_i32, %c0_i32_0 : i32, i32
  }
  func.func @transform_6(%arg0: i32, %arg1: i32) -> i32 {
    %c0_i32 = arith.constant 0 : i32
    %c0_i32_0 = arith.constant 0 : i32
    return %c0_i32 : i32
  }
  func.func @transform_7(%arg0: i32, %arg1: i32) -> (i32, i32) {
    %c0_i32 = arith.constant 0 : i32
    %c0_i32_0 = arith.constant 0 : i32
    return %arg1, %c0_i32 : i32, i32
  }
  func.func @transform_8(%arg0: i32, %arg1: i32) -> (i32, i32) {
    %c0_i32 = arith.constant 0 : i32
    %c0_i32_0 = arith.constant 0 : i32
    %c0_i32_1 = arith.constant 0 : i32
    return %c0_i32, %c0_i32_0 : i32, i32
  }
  func.func @transform_9(%arg0: i32, %arg1: i32) -> (i32, i32, i32) {
    %c0_i32 = arith.constant 0 : i32
    %c0_i32_0 = arith.constant 0 : i32
    return %arg0, %arg1, %c0_i32 : i32, i32, i32
  }
}

</mosaic_0001>

<llo_original>
// kernel: ra_forward.1
$region0: #{ra_forward.1}
  #allocation0 [shape = 'u32[]', space=smem, size = 0x4, offset = 0x4, fixed_abs, tag = 'smem constant byte address 0x4 - core index']
  #allocation1 [shape = 'u32[72,128]{1,0:T(1,128)}', space=vmem, size = 0x9000, scoped, tag = 'internal scratch']
  #allocation2 [shape = 'f32[16,192]{1,0:T(8,128)}', space=vmem, size = 0x4000, scoped, tag = 'scratch operand']
  %s0 = inlined_call_operand.hbm [shape: f32[2,4,16,16], index: 0, kind: input, shape index: {}]
  %s1 = inlined_call_operand.vmem [shape: f32[4,3], index: 1, kind: input, shape index: {}]
  %s2 = inlined_call_operand.vmem [shape: f32[3], index: 2, kind: input, shape index: {}]
  %s3 = inlined_call_operand.vmem [shape: f32[4,3], index: 3, kind: input, shape index: {}]
  %s4 = inlined_call_operand.vmem [shape: f32[3], index: 4, kind: input, shape index: {}]
  %s5 = inlined_call_operand.vmem [shape: f32[4,3], index: 5, kind: input, shape index: {}]
  %s6 = inlined_call_operand.vmem [shape: f32[3], index: 6, kind: input, shape index: {}]
  %s7 = inlined_call_operand.hbm [shape: f32[64,16], index: 7, kind: input, shape index: {}]
  %s8 = inlined_call_operand.vmem [shape: f32[16,64], index: 8, kind: input, shape index: {}]
  %s9 = inlined_call_operand.vmem [shape: f32[2,64,192], index: 9, kind: output, shape index: {}]
  %s10 = sld [smem:[#allocation0]]
  $region105: #{ra_forward.1} parent=0
    _
  %s12 = ssub.s32 1, %s10
  %s13 = scalar_select 0, %s12, %s10
  $region1: #{ra_forward.1} parent=0
    #allocation3 [shape = 'u8[65536]{0}', space=vmem, size = 0x10000, scoped, tag = 'input window, operand 0']
    #allocation4 [shape = 's32[2]{0}', space=sflag, size = 0x8, scoped, tag = 'scoped memory for ra_forward.1']
    #allocation5 [shape = 's32[2]{0}', space=sflag, size = 0x8, scoped, tag = 'scoped memory for ra_forward.1']
    #allocation6 [shape = 'u8[2048]{0}', space=smem, size = 0x800, scoped, tag = 'input window, operand 1, single buffered']
    #allocation7 [shape = 'u8[512]{0}', space=smem, size = 0x200, scoped, tag = 'input window, operand 2, single buffered']
    #allocation8 [shape = 's32[1]{0}', space=sflag, size = 0x4, scoped, tag = 'scoped memory for ra_forward.1']
    #allocation9 [shape = 'u8[2048]{0}', space=smem, size = 0x800, scoped, tag = 'input window, operand 3, single buffered']
    #allocation10 [shape = 'u8[512]{0}', space=smem, size = 0x200, scoped, tag = 'input window, operand 4, single buffered']
    #allocation11 [shape = 's32[1]{0}', space=sflag, size = 0x4, scoped, tag = 'scoped memory for ra_forward.1']
    #allocation12 [shape = 'u8[2048]{0}', space=smem, size = 0x800, scoped, tag = 'input window, operand 5, single buffered']
    #allocation13 [shape = 'u8[512]{0}', space=smem, size = 0x200, scoped, tag = 'input window, operand 6, single buffered']
    #allocation14 [shape = 's32[1]{0}', space=sflag, size = 0x4, scoped, tag = 'scoped memory for ra_forward.1']
    #allocation15 [shape = 'u8[32768]{0}', space=vmem, size = 0x8000, scoped, tag = 'input window, operand 7, single buffered']
    #allocation16 [shape = 's32[1]{0}', space=sflag, size = 0x4, scoped, tag = 'scoped memory for ra_forward.1']
    %14 = vsyncpa [#allocation4], 0
    %s15 = scalar_lea.sflag [#allocation4], 1
    %16 = vsyncpa %s15, 0
    %17 = vsyncpa [#allocation5], 0
    %18 = vsyncpa [#allocation8], 0
    %19 = vsyncpa [#allocation11], 0
    %20 = vsyncpa [#allocation14], 0
    %21 = vsyncpa [#allocation16], 0
    loop: start=0, step=1, limit=4
    $region2: #{ra_forward.1} parent=1 // loop_pre_header
      _
    $region3: #{ra_forward.1} parent=1 // loop_header
      %s23 = sphi 0, %s27
      %p24 = scmp.ge.s32.totalorder %s23, 4
      %s30 = sphi 0, %s42
      %s31 = sphi 0, %s38
      %s32 = sphi 0, %s30
      %s33 = sphi 0, %s31
      %s34 = sphi 0, %s32
      %s35 = sphi 0, %s33
      %s45 = sphi 0, %s47
      %s48 = sphi 0, %s45
      %s49 = sphi 0, %s48
      %s65 = sphi 0, %s49
      %s69 = sphi 0, %s69
      %s71 = sphi 0, %s69
      %s72 = sphi 0, %s71
      %s86 = sphi 0, %s72
      %s90 = sphi 0, %s90
      %s92 = sphi 0, %s90
      %s93 = sphi 0, %s92
      %s107 = sphi 0, %s93
      %s111 = sphi 0, %s111
      %s113 = sphi 0, %s111
      %s114 = sphi 0, %s113
      %s128 = sphi 0, %s114
      %s132 = sphi 0, %s132
      %s134 = sphi 0, %s132
      %s135 = sphi 0, %s134
      %s149 = sphi 0, %s135
      %s153 = sphi 0, %s153
      %s155 = sphi 0, %s153
      %s156 = sphi 0, %s155
      %s170 = sphi 0, %s156
      %s174 = sphi 0, %s174
      %s176 = sphi 0, %s174
      %s177 = sphi 0, %s176
      %s191 = sphi 0, %s177
      %s197 = sphi 0, %s199
      %s200 = sphi 0, %s197
      %s201 = sphi 0, %s200
      %s217 = sphi 0, %s201
      %s221 = sphi 0, %s221
      %s223 = sphi 0, %s221
      %s224 = sphi 0, %s223
      %s238 = sphi 0, %s224
      %s246 = sphi 0, %s248
      %s249 = sphi 0, %s246
      %s250 = sphi 0, %s249
      %s266 = sphi 0, %s250
    $region4: #{ra_forward.1} parent=1 // loop_header_branch
      %26 = sbr.rel (%p24) target = $region8
    $region5: #{ra_forward.1} parent=1 // loop_body
      %s28 = ssub.s32 %s23, 1
      %s29 = ssub.s32 %s23, 2
      %s36 = sadd.s32 1, %s31
      %p37 = scmp.ge.s32.totalorder %s36, 1
      %s38 = scalar_select %p37, 0, %s36
      %s39 = sadd.s32 1, %s30
      %s40 = scalar_select %p37, %s39, %s30
      %p41 = scmp.ge.s32.totalorder %s40, 2
      %s42 = scalar_select %p41, 0, %s40
      %s43 = ssub.s32 %s30, %s42
      %p44 = scmp.eq.s32.totalorder %s43, 0
      %s46 = sadd.s32 %s45, 1
      %s47 = scalar_select %p44, %s45, %s46
      %p50 = pneg %p44
      %p51 = scmp.eq.s32.totalorder %s23, 1
      %p52 = por %p50, %p51
      %p53 = scmp.ne.s32.totalorder %s45, %s48
      %p54 = scmp.eq.s32.totalorder %s23, 0
      %p55 = por %p53, %p54
      %p56 = scmp.ne.s32.totalorder %s45, %s48
      %p57 = scmp.eq.s32.totalorder %s28, 1
      %p58 = por %p56, %p57
      %p59 = scmp.ne.s32.totalorder %s48, %s49
      %p60 = scmp.eq.s32.totalorder %s28, 0
      %p61 = por %p59, %p60
      %p62 = scmp.ne.s32.totalorder %s48, %s49
      %p63 = scmp.eq.s32.totalorder %s29, 1
      %p64 = por %p62, %p63
      %p66 = scmp.ne.s32.totalorder %s49, %s65
      %p67 = scmp.eq.s32.totalorder %s29, 0
      %p68 = por %p66, %p67
      %s70 = sadd.s32 %s69, 1
      %p73 = scmp.eq.s32.totalorder %s23, 1
      %p74 = scmp.ne.s32.totalorder %s69, %s71
      %p75 = scmp.eq.s32.totalorder %s23, 0
      %p76 = por %p74, %p75
      %p77 = scmp.ne.s32.totalorder %s69, %s71
      %p78 = scmp.eq.s32.totalorder %s28, 1
      %p79 = por %p77, %p78
      %p80 = scmp.ne.s32.totalorder %s71, %s72
      %p81 = scmp.eq.s32.totalorder %s28, 0
      %p82 = por %p80, %p81
      %p83 = scmp.ne.s32.totalorder %s71, %s72
      %p84 = scmp.eq.s32.totalorder %s29, 1
      %p85 = por %p83, %p84
      %p87 = scmp.ne.s32.totalorder %s72, %s86
      %p88 = scmp.eq.s32.totalorder %s29, 0
      %p89 = por %p87, %p88
      %s91 = sadd.s32 %s90, 1
      %p94 = scmp.eq.s32.totalorder %s23, 1
      %p95 = scmp.ne.s32.totalorder %s90, %s92
      %p96 = scmp.eq.s32.totalorder %s23, 0
      %p97 = por %p95, %p96
      %p98 = scmp.ne.s32.totalorder %s90, %s92
      %p99 = scmp.eq.s32.totalorder %s28, 1
      %p100 = por %p98, %p99
      %p101 = scmp.ne.s32.totalorder %s92, %s93
      %p102 = scmp.eq.s32.totalorder %s28, 0
      %p103 = por %p101, %p102
      %p104 = scmp.ne.s32.totalorder %s92, %s93
      %p105 = scmp.eq.s32.totalorder %s29, 1
      %p106 = por %p104, %p105
      %p108 = scmp.ne.s32.totalorder %s93, %s107
      %p109 = scmp.eq.s32.totalorder %s29, 0
      %p110 = por %p108, %p109
      %s112 = sadd.s32 %s111, 1
      %p115 = scmp.eq.s32.totalorder %s23, 1
      %p116 = scmp.ne.s32.totalorder %s111, %s113
      %p117 = scmp.eq.s32.totalorder %s23, 0
      %p118 = por %p116, %p117
      %p119 = scmp.ne.s32.totalorder %s111, %s113
      %p120 = scmp.eq.s32.totalorder %s28, 1
      %p121 = por %p119, %p120
      %p122 = scmp.ne.s32.totalorder %s113, %s114
      %p123 = scmp.eq.s32.totalorder %s28, 0
      %p124 = por %p122, %p123
      %p125 = scmp.ne.s32.totalorder %s113, %s114
      %p126 = scmp.eq.s32.totalorder %s29, 1
      %p127 = por %p125, %p126
      %p129 = scmp.ne.s32.totalorder %s114, %s128
      %p130 = scmp.eq.s32.totalorder %s29, 0
      %p131 = por %p129, %p130
      %s133 = sadd.s32 %s132, 1
      %p136 = scmp.eq.s32.totalorder %s23, 1
      %p137 = scmp.ne.s32.totalorder %s132, %s134
      %p138 = scmp.eq.s32.totalorder %s23, 0
      %p139 = por %p137, %p138
      %p140 = scmp.ne.s32.totalorder %s132, %s134
      %p141 = scmp.eq.s32.totalorder %s28, 1
      %p142 = por %p140, %p141
      %p143 = scmp.ne.s32.totalorder %s134, %s135
      %p144 = scmp.eq.s32.totalorder %s28, 0
      %p145 = por %p143, %p144
      %p146 = scmp.ne.s32.totalorder %s134, %s135
      %p147 = scmp.eq.s32.totalorder %s29, 1
      %p148 = por %p146, %p147
      %p150 = scmp.ne.s32.totalorder %s135, %s149
      %p151 = scmp.eq.s32.totalorder %s29, 0
      %p152 = por %p150, %p151
      %s154 = sadd.s32 %s153, 1
      %p157 = scmp.eq.s32.totalorder %s23, 1
      %p158 = scmp.ne.s32.totalorder %s153, %s155
      %p159 = scmp.eq.s32.totalorder %s23, 0
      %p160 = por %p158, %p159
      %p161 = scmp.ne.s32.totalorder %s153, %s155
      %p162 = scmp.eq.s32.totalorder %s28, 1
      %p163 = por %p161, %p162
      %p164 = scmp.ne.s32.totalorder %s155, %s156
      %p165 = scmp.eq.s32.totalorder %s28, 0
      %p166 = por %p164, %p165
      %p167 = scmp.ne.s32.totalorder %s155, %s156
      %p168 = scmp.eq.s32.totalorder %s29, 1
      %p169 = por %p167, %p168
      %p171 = scmp.ne.s32.totalorder %s156, %s170
      %p172 = scmp.eq.s32.totalorder %s29, 0
      %p173 = por %p171, %p172
      %s175 = sadd.s32 %s174, 1
      %p178 = scmp.eq.s32.totalorder %s23, 1
      %p179 = scmp.ne.s32.totalorder %s174, %s176
      %p180 = scmp.eq.s32.totalorder %s23, 0
      %p181 = por %p179, %p180
      %p182 = scmp.ne.s32.totalorder %s174, %s176
      %p183 = scmp.eq.s32.totalorder %s28, 1
      %p184 = por %p182, %p183
      %p185 = scmp.ne.s32.totalorder %s176, %s177
      %p186 = scmp.eq.s32.totalorder %s28, 0
      %p187 = por %p185, %p186
      %p188 = scmp.ne.s32.totalorder %s176, %s177
      %p189 = scmp.eq.s32.totalorder %s29, 1
      %p190 = por %p188, %p189
      %p192 = scmp.ne.s32.totalorder %s177, %s191
      %p193 = scmp.eq.s32.totalorder %s29, 0
      %p194 = por %p192, %p193
      %s195 = ssub.s32 %s31, %s38
      %p196 = scmp.eq.s32.totalorder %s195, 0
      %s198 = sadd.s32 %s197, 1
      %s199 = scalar_select %p196, %s197, %s198
      %p202 = pneg %p196
      %p203 = scmp.eq.s32.totalorder %s23, 1
      %p204 = por %p202, %p203
      %p205 = scmp.ne.s32.totalorder %s197, %s200
      %p206 = scmp.eq.s32.totalorder %s23, 0
      %p207 = por %p205, %p206
      %p208 = scmp.ne.s32.totalorder %s197, %s200
      %p209 = scmp.eq.s32.totalorder %s28, 1
      %p210 = por %p208, %p209
      %p211 = scmp.ne.s32.totalorder %s200, %s201
      %p212 = scmp.eq.s32.totalorder %s28, 0
      %p213 = por %p211, %p212
      %p214 = scmp.ne.s32.totalorder %s200, %s201
      %p215 = scmp.eq.s32.totalorder %s29, 1
      %p216 = por %p214, %p215
      %p218 = scmp.ne.s32.totalorder %s201, %s217
      %p219 = scmp.eq.s32.totalorder %s29, 0
      %p220 = por %p218, %p219
      %s222 = sadd.s32 %s221, 1
      %p225 = scmp.eq.s32.totalorder %s23, 1
      %p226 = scmp.ne.s32.totalorder %s221, %s223
      %p227 = scmp.eq.s32.totalorder %s23, 0
      %p228 = por %p226, %p227
      %p229 = scmp.ne.s32.totalorder %s221, %s223
      %p230 = scmp.eq.s32.totalorder %s28, 1
      %p231 = por %p229, %p230
      %p232 = scmp.ne.s32.totalorder %s223, %s224
      %p233 = scmp.eq.s32.totalorder %s28, 0
      %p234 = por %p232, %p233
      %p235 = scmp.ne.s32.totalorder %s223, %s224
      %p236 = scmp.eq.s32.totalorder %s29, 1
      %p237 = por %p235, %p236
      %p239 = scmp.ne.s32.totalorder %s224, %s238
      %p240 = scmp.eq.s32.totalorder %s29, 0
      %p241 = por %p239, %p240
      %s242 = ssub.s32 %s30, %s42
      %s243 = ssub.s32 %s31, %s38
      %s244 = sor.u32 %s242, %s243
      %p245 = scmp.eq.s32.totalorder %s244, 0
      %s247 = sadd.s32 %s246, 1
      %s248 = scalar_select %p245, %s246, %s247
      %p251 = pneg %p245
      %p252 = scmp.eq.s32.totalorder %s23, 1
      %p253 = por %p251, %p252
      %p254 = scmp.ne.s32.totalorder %s246, %s249
      %p255 = scmp.eq.s32.totalorder %s23, 0
      %p256 = por %p254, %p255
      %p257 = scmp.ne.s32.totalorder %s246, %s249
      %p258 = scmp.eq.s32.totalorder %s28, 1
      %p259 = por %p257, %p258
      %p260 = scmp.ne.s32.totalorder %s249, %s250
      %p261 = scmp.eq.s32.totalorder %s28, 0
      %p262 = por %p260, %p261
      %p263 = scmp.ne.s32.totalorder %s249, %s250
      %p264 = scmp.eq.s32.totalorder %s29, 1
      %p265 = por %p263, %p264
      %p267 = scmp.ne.s32.totalorder %s250, %s266
      %p268 = scmp.eq.s32.totalorder %s29, 0
      %p269 = por %p267, %p268
      %p270 = scmp.le.s32.totalorder 1, %s23
      %p271 = scmp.lt.s32.totalorder %s23, 3
      %p272 = pnand %p270, %p271
      %p273 = pneg %p272
      // Predicated region
      $region9: #{ra_forward.1} parent=5 // pred_check
        _
      $region10: #{ra_forward.1} parent=5 // pred_check_branch
        %275 = sbr.rel (%p272) target = $region12
      $region11: #{ra_forward.1} parent=5 // pred_region
        %s276 = ssub.s32 %s23, 1
        // Predicated region
        $region13: #{ra_forward.1} parent=11 // pred_check
          %p277 = pneg %p82
        $region14: #{ra_forward.1} parent=11 // pred_check_branch
          %279 = sbr.rel (%p277) target = $region16
        $region15: #{ra_forward.1} parent=11 // pred_region
          %281 = vsyncadd [#allocation5], 0
          %s283 = sshll.u32 %s1, 4
          %s284 = int_to_ptr.vmem [resolvable:$true] %s283
          %286 = dma.vmem_to_smem %s284, 64, [#allocation6], [#allocation5]
        $region16: #{ra_forward.1} parent=11 // pred_fallthru
          _
        // Predicated region
        $region17: #{ra_forward.1} parent=11 // pred_check
          %p287 = pneg %p103
        $region18: #{ra_forward.1} parent=11 // pred_check_branch
          %289 = sbr.rel (%p287) target = $region20
        $region19: #{ra_forward.1} parent=11 // pred_region
          %291 = vsyncadd [#allocation8], 0
          %s293 = sshll.u32 %s2, 4
          %s294 = int_to_ptr.vmem [resolvable:$true] %s293
          %296 = dma.vmem_to_smem %s294, 16, [#allocation7], [#allocation8]
        $region20: #{ra_forward.1} parent=11 // pred_fallthru
          _
        // Predicated region
        $region21: #{ra_forward.1} parent=11 // pred_check
          %p297 = pneg %p124
        $region22: #{ra_forward.1} parent=11 // pred_check_branch
          %299 = sbr.rel (%p297) target = $region24
        $region23: #{ra_forward.1} parent=11 // pred_region
          %301 = vsyncadd [#allocation8], 0
          %s303 = sshll.u32 %s3, 4
          %s304 = int_to_ptr.vmem [resolvable:$true] %s303
          %306 = dma.vmem_to_smem %s304, 64, [#allocation9], [#allocation8]
        $region24: #{ra_forward.1} parent=11 // pred_fallthru
          _
        // Predicated region
        $region25: #{ra_forward.1} parent=11 // pred_check
          %p307 = pneg %p145
        $region26: #{ra_forward.1} parent=11 // pred_check_branch
          %309 = sbr.rel (%p307) target = $region28
        $region27: #{ra_forward.1} parent=11 // pred_region
          %311 = vsyncadd [#allocation11], 0
          %s313 = sshll.u32 %s4, 4
          %s314 = int_to_ptr.vmem [resolvable:$true] %s313
          %316 = dma.vmem_to_smem %s314, 16, [#allocation10], [#allocation11]
        $region28: #{ra_forward.1} parent=11 // pred_fallthru
          _
        // Predicated region
        $region29: #{ra_forward.1} parent=11 // pred_check
          %p317 = pneg %p166
        $region30: #{ra_forward.1} parent=11 // pred_check_branch
          %319 = sbr.rel (%p317) target = $region32
        $region31: #{ra_forward.1} parent=11 // pred_region
          %321 = vsyncadd [#allocation11], 0
          %s323 = sshll.u32 %s5, 4
          %s324 = int_to_ptr.vmem [resolvable:$true] %s323
          %326 = dma.vmem_to_smem %s324, 64, [#allocation12], [#allocation11]
        $region32: #{ra_forward.1} parent=11 // pred_fallthru
          _
        // Predicated region
        $region33: #{ra_forward.1} parent=11 // pred_check
          %p327 = pneg %p187
        $region34: #{ra_forward.1} parent=11 // pred_check_branch
          %329 = sbr.rel (%p327) target = $region36
        $region35: #{ra_forward.1} parent=11 // pred_region
          %331 = vsyncadd [#allocation14], 0
          %s333 = sshll.u32 %s6, 4
          %s334 = int_to_ptr.vmem [resolvable:$true] %s333
          %336 = dma.vmem_to_smem %s334, 16, [#allocation13], [#allocation14]
        $region36: #{ra_forward.1} parent=11 // pred_fallthru
          _
        // Predicated region
        $region37: #{ra_forward.1} parent=11 // pred_check
          %p337 = pneg %p213
        $region38: #{ra_forward.1} parent=11 // pred_check_branch
          %339 = sbr.rel (%p337) target = $region40
        $region39: #{ra_forward.1} parent=11 // pred_region
          %s340 = smul.u32 8, %s33
          %342 = vsyncadd [#allocation16], 0
          %s343 = smul.addr %s340, 8
          %s344 = scalar_lea.hbm %s7, %s343
          %s345 = sshll.u32 %s344, 4
          %s346 = int_to_ptr.hbm [resolvable:$true] %s345
          %s347 = sshll.u32 [#allocation15], 4
          %s348 = int_to_ptr.vmem [resolvable:$true] %s347
          %353 = dma.hbm_to_vmem [thread:$0]  %s346, 1024, %s348, [#allocation16], 128, 128, 8
        $region40: #{ra_forward.1} parent=11 // pred_fallthru
          _
        // Predicated region
        $region41: #{ra_forward.1} parent=11 // pred_check
          %p354 = pneg %p234
        $region42: #{ra_forward.1} parent=11 // pred_check_branch
          %356 = sbr.rel (%p354) target = $region44
        $region43: #{ra_forward.1} parent=11 // pred_region
          _
        $region44: #{ra_forward.1} parent=11 // pred_fallthru
          _
      $region12: #{ra_forward.1} parent=5 // pred_fallthru
        _
      %p357 = scmp.lt.s32.totalorder %s23, 2
      // Predicated region
      $region45: #{ra_forward.1} parent=5 // pred_check
        %p358 = pneg %p357
      $region46: #{ra_forward.1} parent=5 // pred_check_branch
        %360 = sbr.rel (%p358) target = $region48
      $region47: #{ra_forward.1} parent=5 // pred_region
        // Predicated region
        $region49: #{ra_forward.1} parent=47 // pred_check
          %p361 = pneg %p55
        $region50: #{ra_forward.1} parent=47 // pred_check_branch
          %363 = sbr.rel (%p361) target = $region52
        $region51: #{ra_forward.1} parent=47 // pred_region
          %s364 = sand.u32 %s45, 1
          %s365 = scalar_lea.sflag [#allocation4], %s364
          %s366 = sand.u32 %s45, 1
          %s367 = smul.addr %s366, 64
          %s368 = scalar_lea.vmem [#allocation3], %s367
          %370 = vsyncadd %s365, 0
          %s371 = smul.addr %s30, 8
          %s372 = smul.addr %s371, 8
          %s373 = scalar_lea.hbm %s0, %s372
          %s374 = sshll.u32 %s373, 4
          %s375 = int_to_ptr.hbm [resolvable:$true] %s374
          %s376 = sshll.u32 %s368, 4
          %s377 = int_to_ptr.vmem [resolvable:$true] %s376
          %382 = dma.hbm_to_vmem [thread:$0]  %s375, 1024, %s377, %s365, 128, 128, 8
        $region52: #{ra_forward.1} parent=47 // pred_fallthru
          _
      $region48: #{ra_forward.1} parent=5 // pred_fallthru
        _
      %p383 = scmp.le.s32.totalorder 1, %s23
      %p384 = scmp.lt.s32.totalorder %s23, 3
      %p385 = pnand %p383, %p384
      %p386 = pneg %p385
      // Predicated region
      $region53: #{ra_forward.1} parent=5 // pred_check
        _
      $region54: #{ra_forward.1} parent=5 // pred_check_branch
        %388 = sbr.rel (%p385) target = $region56
      $region55: #{ra_forward.1} parent=5 // pred_region
        %s389 = ssub.s32 %s23, 1
        %s390 = sand.u32 %s48, 1
        %s391 = scalar_lea.sflag [#allocation4], %s390
        %s392 = sand.u32 %s48, 1
        %s393 = smul.addr %s392, 64
        %s394 = scalar_lea.vmem [#allocation3], %s393
        // Predicated region
        $region57: #{ra_forward.1} parent=55 // pred_check
          %p395 = pneg %p61
        $region58: #{ra_forward.1} parent=55 // pred_check_branch
          %397 = sbr.rel (%p395) target = $region60
        $region59: #{ra_forward.1} parent=55 // pred_region
          %399 = dma.done %s391, 1024
        $region60: #{ra_forward.1} parent=55 // pred_fallthru
          _
        // Predicated region
        $region61: #{ra_forward.1} parent=55 // pred_check
          %p400 = pneg %p82
        $region62: #{ra_forward.1} parent=55 // pred_check_branch
          %402 = sbr.rel (%p400) target = $region64
        $region63: #{ra_forward.1} parent=55 // pred_region
          %404 = dma.done [#allocation5], 64
        $region64: #{ra_forward.1} parent=55 // pred_fallthru
          _
        // Predicated region
        $region65: #{ra_forward.1} parent=55 // pred_check
          %p405 = pneg %p103
        $region66: #{ra_forward.1} parent=55 // pred_check_branch
          %407 = sbr.rel (%p405) target = $region68
        $region67: #{ra_forward.1} parent=55 // pred_region
          %409 = dma.done [#allocation8], 16
        $region68: #{ra_forward.1} parent=55 // pred_fallthru
          _
        // Predicated region
        $region69: #{ra_forward.1} parent=55 // pred_check
          %p410 = pneg %p124
        $region70: #{ra_forward.1} parent=55 // pred_check_branch
          %412 = sbr.rel (%p410) target = $region72
        $region71: #{ra_forward.1} parent=55 // pred_region
          %414 = dma.done [#allocation8], 64
        $region72: #{ra_forward.1} parent=55 // pred_fallthru
          _
        // Predicated region
        $region73: #{ra_forward.1} parent=55 // pred_check
          %p415 = pneg %p145
        $region74: #{ra_forward.1} parent=55 // pred_check_branch
          %417 = sbr.rel (%p415) target = $region76
        $region75: #{ra_forward.1} parent=55 // pred_region
          %419 = dma.done [#allocation11], 16
        $region76: #{ra_forward.1} parent=55 // pred_fallthru
          _
        // Predicated region
        $region77: #{ra_forward.1} parent=55 // pred_check
          %p420 = pneg %p166
        $region78: #{ra_forward.1} parent=55 // pred_check_branch
          %422 = sbr.rel (%p420) target = $region80
        $region79: #{ra_forward.1} parent=55 // pred_region
          %424 = dma.done [#allocation11], 64
        $region80: #{ra_forward.1} parent=55 // pred_fallthru
          _
        // Predicated region
        $region81: #{ra_forward.1} parent=55 // pred_check
          %p425 = pneg %p187
        $region82: #{ra_forward.1} parent=55 // pred_check_branch
          %427 = sbr.rel (%p425) target = $region84
        $region83: #{ra_forward.1} parent=55 // pred_region
          %429 = dma.done [#allocation14], 16
        $region84: #{ra_forward.1} parent=55 // pred_fallthru
          _
        // Predicated region
        $region85: #{ra_forward.1} parent=55 // pred_check
          %p430 = pneg %p213
        $region86: #{ra_forward.1} parent=55 // pred_check_branch
          %432 = sbr.rel (%p430) target = $region88
        $region87: #{ra_forward.1} parent=55 // pred_region
          %434 = dma.done [#allocation16], 1024
        $region88: #{ra_forward.1} parent=55 // pred_fallthru
          _
        %435 = sfence
        %s436 = sand.u32 %s48, 1
        %s437 = scalar_lea.sflag [#allocation4], %s436
        %s438 = sand.u32 %s48, 1
        %s439 = smul.addr %s438, 64
        %s440 = scalar_lea.vmem [#allocation3], %s439
        %p441 = pneg %p61
        %p442 = pneg %p58
        %p443 = pneg %p82
        %p444 = pneg %p79
        %p445 = pneg %p103
        %p446 = pneg %p100
        %p447 = pneg %p124
        %p448 = pneg %p121
        %p449 = pneg %p145
        %p450 = pneg %p142
        %p451 = pneg %p166
        %p452 = pneg %p163
        %p453 = pneg %p187
        %p454 = pneg %p184
        %p455 = pneg %p213
        %p456 = pneg %p210
        %p457 = pneg %p234
        %p458 = pneg %p231
        %p459 = pneg %p262
        %p460 = pneg %p259
        %s461 = smul.u32 8, %s33
        %p462 = scmp.lt.s32.totalorder %s32, 1
        %s463 = scalar_select %p462, %s32, 1
        %p464 = scmp.lt.s32.totalorder %s461, 7
        %s465 = scalar_select %p464, %s461, 7
        %s466 = smul.addr %s465, 2
        %s467 = smul.addr %s463, 16
        %s468 = sadd.s32 %s466, %s467
        %s469 = smul.addr %s468, 8
        %s470 = scalar_lea.vmem %s9, %s469
        %s471 = smul.u32 8, %s33
        %s472 = smul.u32 8, %s33
        %p473 = scmp.lt.s32.totalorder %s32, 1
        %s474 = scalar_select %p473, %s32, 1
        %p475 = scmp.lt.s32.totalorder %s472, 7
        %s476 = scalar_select %p475, %s472, 7
        %s477 = smul.addr %s476, 2
        %s478 = smul.addr %s474, 16
        %s479 = sadd.s32 %s477, %s478
        %s480 = smul.addr %s479, 8
        %s481 = scalar_lea.vmem %s9, %s480
        %s482 = smul.u32 8, %s33
        %p483 = scmp.eq.s32.totalorder %s33, 0
        // Predicated region
        $region89: #{ra_forward.1} parent=55 // pred_check
          %p484 = pneg %p483
        $region90: #{ra_forward.1} parent=55 // pred_check_branch
          %486 = sbr.rel (%p484) target = $region92
        $region91: #{ra_forward.1} parent=55 // pred_region
          %v487 = vld [vmem:[%s394] sm:$0xff]
          %v488 = vld [vmem:[%s394 + $0x8] sm:$0xff]
          %s489 = scalar_lea.vmem %s394, 16 [#allocation3]
          %v490 = vld [vmem:[%s489] sm:$0xff]
          %v491 = vld [vmem:[%s489 + $0x8] sm:$0xff]
          %s492 = scalar_lea.vmem %s394, 32 [#allocation3]
          %v493 = vld [vmem:[%s492] sm:$0xff]
          %v494 = vld [vmem:[%s492 + $0x8] sm:$0xff]
          %s495 = scalar_lea.vmem %s394, 48 [#allocation3]
          %v496 = vld [vmem:[%s495] sm:$0xff]
          %v497 = vld [vmem:[%s495 + $0x8] sm:$0xff]
          %s498 = sld [smem:[#allocation6]]
          %v499 = vstv %s498
          %v500 = vmul.f32 %v487, %v499
          %v501 = vmul.f32 %v488, %v499
          %s502 = sld [smem:[#allocation9]]
          %v503 = vstv %s502
          %v504 = vmul.f32 %v487, %v503
          %v505 = vmul.f32 %v488, %v503
          %s506 = sld [smem:[#allocation12]]
          %v507 = vstv %s506
          %v508 = vmul.f32 %v487, %v507
          %v509 = vmul.f32 %v488, %v507
          %s510 = sld [smem:[#allocation6 + $0x80]]
          %v511 = vstv %s510
          %v512 = vmul.f32 %v490, %v511
          %v513 = vmul.f32 %v491, %v511
          %v514 = vadd.f32 %v500, %v512
          %v515 = vadd.f32 %v501, %v513
          %s516 = sld [smem:[#allocation9 + $0x80]]
          %v517 = vstv %s516
          %v518 = vmul.f32 %v490, %v517
          %v519 = vmul.f32 %v491, %v517
          %v520 = vadd.f32 %v504, %v518
          %v521 = vadd.f32 %v505, %v519
          %s522 = sld [smem:[#allocation12 + $0x80]]
          %v523 = vstv %s522
          %v524 = vmul.f32 %v490, %v523
          %v525 = vmul.f32 %v491, %v523
          %v526 = vadd.f32 %v508, %v524
          %v527 = vadd.f32 %v509, %v525
          %s528 = sld [smem:[#allocation6 + $0x100]]
          %v529 = vstv %s528
          %v530 = vmul.f32 %v493, %v529
          %v531 = vmul.f32 %v494, %v529
          %v532 = vadd.f32 %v514, %v530
          %v533 = vadd.f32 %v515, %v531
          %s534 = sld [smem:[#allocation9 + $0x100]]
          %v535 = vstv %s534
          %v536 = vmul.f32 %v493, %v535
          %v537 = vmul.f32 %v494, %v535
          %v538 = vadd.f32 %v520, %v536
          %v539 = vadd.f32 %v521, %v537
          %s540 = sld [smem:[#allocation12 + $0x100]]
          %v541 = vstv %s540
          %v542 = vmul.f32 %v493, %v541
          %v543 = vmul.f32 %v494, %v541
          %v544 = vadd.f32 %v526, %v542
          %v545 = vadd.f32 %v527, %v543
          %s546 = sld [smem:[#allocation6 + $0x180]]
          %v547 = vstv %s546
          %v548 = vmul.f32 %v496, %v547
          %v549 = vmul.f32 %v497, %v547
          %v550 = vadd.f32 %v532, %v548
          %v551 = vadd.f32 %v533, %v549
          %s552 = sld [smem:[#allocation9 + $0x180]]
          %v553 = vstv %s552
          %v554 = vmul.f32 %v496, %v553
          %v555 = vmul.f32 %v497, %v553
          %v556 = vadd.f32 %v538, %v554
          %v557 = vadd.f32 %v539, %v555
          %s558 = sld [smem:[#allocation12 + $0x180]]
          %v559 = vstv %s558
          %v560 = vmul.f32 %v496, %v559
          %v561 = vmul.f32 %v497, %v559
          %v562 = vadd.f32 %v544, %v560
          %v563 = vadd.f32 %v545, %v561
          %s564 = sld [smem:[#allocation7]]
          %v565 = vstv %s564
          %v566 = vadd.f32 %v550, %v565
          %v567 = vadd.f32 %v551, %v565
          %s568 = sld [smem:[#allocation10]]
          %v569 = vstv %s568
          %v570 = vadd.f32 %v556, %v569
          %v571 = vadd.f32 %v557, %v569
          %s572 = sld [smem:[#allocation13]]
          %v573 = vstv %s572
          %v574 = vadd.f32 %v562, %v573
          %v575 = vadd.f32 %v563, %v573
          %v576 = vxor.u32 %v566, 2147483648
          %v577 = vxor.u32 %v567, 2147483648
          %v578 = vmul.f32 %v576, 1.442695
          %v579 = vpow.pop %v578
          %v580 = vmul.f32 %v577, 1.442695
          %v581 = vpow.pop %v580
          %v582 = vadd.f32 %v579, 1.0
          %v583 = vadd.f32 %v581, 1.0
          %v584 = vrcp.pop %v582
          %v585 = vmul.f32 %v582, %v584
          %v586 = vsub.f32 1.0, %v585
          %v587 = vmul.f32 %v584, %v586
          %v588 = vadd.f32 %v584, %v587
          %vm589 = vweird.f32 %v582
          %vm590 = vweird.f32 %v584
          %vm591 = vmor %vm589, %vm590
          %v592 = vsel %vm591, %v584, %v588
          %v593 = vand.u32 2147483647, %v582
          %vm594 = vcmp.eq.f32.partialorder %v593, 8.507059e+37
          %v595 = vand.u32 %v582, 2147483648
          %v596 = vor.u32 1.1754944e-38, %v595
          %v597 = vsel %vm594, %v596, %v592
          %v598 = vmul.f32 1.0, %v597
          %v599 = vrcp.pop %v583
          %v600 = vmul.f32 %v583, %v599
          %v601 = vsub.f32 1.0, %v600
          %v602 = vmul.f32 %v599, %v601
          %v603 = vadd.f32 %v599, %v602
          %vm604 = vweird.f32 %v583
          %vm605 = vweird.f32 %v599
          %vm606 = vmor %vm604, %vm605
          %v607 = vsel %vm606, %v599, %v603
          %v608 = vand.u32 2147483647, %v583
          %vm609 = vcmp.eq.f32.partialorder %v608, 8.507059e+37
          %v610 = vand.u32 %v583, 2147483648
          %v611 = vor.u32 1.1754944e-38, %v610
          %v612 = vsel %vm609, %v611, %v607
          %v613 = vmul.f32 1.0, %v612
          %v614 = vmul.f32 %v598, %v574
          %v615 = vmul.f32 %v613, %v575
          %v616 = vadd.f32 %v570, %v614
          %v617 = vadd.f32 %v571, %v615
          %s618 = sld [smem:[#allocation6 + $0x1]]
          %v619 = vstv %s618
          %v620 = vmul.f32 %v487, %v619
          %v621 = vmul.f32 %v488, %v619
          %s622 = sld [smem:[#allocation9 + $0x1]]
          %v623 = vstv %s622
          %v624 = vmul.f32 %v487, %v623
          %v625 = vmul.f32 %v488, %v623
          %s626 = sld [smem:[#allocation12 + $0x1]]
          %v627 = vstv %s626
          %v628 = vmul.f32 %v487, %v627
          %v629 = vmul.f32 %v488, %v627
          %s630 = sld [smem:[#allocation6 + $0x81]]
          %v631 = vstv %s630
          %v632 = vmul.f32 %v490, %v631
          %v633 = vmul.f32 %v491, %v631
          %v634 = vadd.f32 %v620, %v632
          %v635 = vadd.f32 %v621, %v633
          %s636 = sld [smem:[#allocation9 + $0x81]]
          %v637 = vstv %s636
          %v638 = vmul.f32 %v490, %v637
          %v639 = vmul.f32 %v491, %v637
          %v640 = vadd.f32 %v624, %v638
          %v641 = vadd.f32 %v625, %v639
          %s642 = sld [smem:[#allocation12 + $0x81]]
          %v643 = vstv %s642
          %v644 = vmul.f32 %v490, %v643
          %v645 = vmul.f32 %v491, %v643
          %v646 = vadd.f32 %v628, %v644
          %v647 = vadd.f32 %v629, %v645
          %s648 = sld [smem:[#allocation6 + $0x101]]
          %v649 = vstv %s648
          %v650 = vmul.f32 %v493, %v649
          %v651 = vmul.f32 %v494, %v649
          %v652 = vadd.f32 %v634, %v650
          %v653 = vadd.f32 %v635, %v651
          %s654 = sld [smem:[#allocation9 + $0x101]]
          %v655 = vstv %s654
          %v656 = vmul.f32 %v493, %v655
          %v657 = vmul.f32 %v494, %v655
          %v658 = vadd.f32 %v640, %v656
          %v659 = vadd.f32 %v641, %v657
          %s660 = sld [smem:[#allocation12 + $0x101]]
          %v661 = vstv %s660
          %v662 = vmul.f32 %v493, %v661
          %v663 = vmul.f32 %v494, %v661
          %v664 = vadd.f32 %v646, %v662
          %v665 = vadd.f32 %v647, %v663
          %s666 = sld [smem:[#allocation6 + $0x181]]
          %v667 = vstv %s666
          %v668 = vmul.f32 %v496, %v667
          %v669 = vmul.f32 %v497, %v667
          %v670 = vadd.f32 %v652, %v668
          %v671 = vadd.f32 %v653, %v669
          %s672 = sld [smem:[#allocation9 + $0x181]]
          %v673 = vstv %s672
          %v674 = vmul.f32 %v496, %v673
          %v675 = vmul.f32 %v497, %v673
          %v676 = vadd.f32 %v658, %v674
          %v677 = vadd.f32 %v659, %v675
          %s678 = sld [smem:[#allocation12 + $0x181]]
          %v679 = vstv %s678
          %v680 = vmul.f32 %v496, %v679
          %v681 = vmul.f32 %v497, %v679
          %v682 = vadd.f32 %v664, %v680
          %v683 = vadd.f32 %v665, %v681
          %s684 = sld [smem:[#allocation7 + $0x1]]
          %v685 = vstv %s684
          %v686 = vadd.f32 %v670, %v685
          %v687 = vadd.f32 %v671, %v685
          %s688 = sld [smem:[#allocation10 + $0x1]]
          %v689 = vstv %s688
          %v690 = vadd.f32 %v676, %v689
          %v691 = vadd.f32 %v677, %v689
          %s692 = sld [smem:[#allocation13 + $0x1]]
          %v693 = vstv %s692
          %v694 = vadd.f32 %v682, %v693
          %v695 = vadd.f32 %v683, %v693
          %v696 = vxor.u32 %v686, 2147483648
          %v697 = vxor.u32 %v687, 2147483648
          %v698 = vmul.f32 %v696, 1.442695
          %v699 = vpow.pop %v698
          %v700 = vmul.f32 %v697, 1.442695
          %v701 = vpow.pop %v700
          %v702 = vadd.f32 %v699, 1.0
          %v703 = vadd.f32 %v701, 1.0
          %v704 = vrcp.pop %v702
          %v705 = vmul.f32 %v702, %v704
          %v706 = vsub.f32 1.0, %v705
          %v707 = vmul.f32 %v704, %v706
          %v708 = vadd.f32 %v704, %v707
          %vm709 = vweird.f32 %v702
          %vm710 = vweird.f32 %v704
          %vm711 = vmor %vm709, %vm710
          %v712 = vsel %vm711, %v704, %v708
          %v713 = vand.u32 2147483647, %v702
          %vm714 = vcmp.eq.f32.partialorder %v713, 8.507059e+37
          %v715 = vand.u32 %v702, 2147483648
          %v716 = vor.u32 1.1754944e-38, %v715
          %v717 = vsel %vm714, %v716, %v712
          %v718 = vmul.f32 1.0, %v717
          %v719 = vrcp.pop %v703
          %v720 = vmul.f32 %v703, %v719
          %v721 = vsub.f32 1.0, %v720
          %v722 = vmul.f32 %v719, %v721
          %v723 = vadd.f32 %v719, %v722
          %vm724 = vweird.f32 %v703
          %vm725 = vweird.f32 %v719
          %vm726 = vmor %vm724, %vm725
          %v727 = vsel %vm726, %v719, %v723
          %v728 = vand.u32 2147483647, %v703
          %vm729 = vcmp.eq.f32.partialorder %v728, 8.507059e+37
          %v730 = vand.u32 %v703, 2147483648
          %v731 = vor.u32 1.1754944e-38, %v730
          %v732 = vsel %vm729, %v731, %v727
          %v733 = vmul.f32 1.0, %v732
          %v734 = vmul.f32 %v718, %v694
          %v735 = vmul.f32 %v733, %v695
          %v736 = vadd.f32 %v690, %v734
          %v737 = vadd.f32 %v691, %v735
          %s738 = sld [smem:[#allocation6 + $0x2]]
          %v739 = vstv %s738
          %v740 = vmul.f32 %v487, %v739
          %v741 = vmul.f32 %v488, %v739
          %s742 = sld [smem:[#allocation9 + $0x2]]
          %v743 = vstv %s742
          %v744 = vmul.f32 %v487, %v743
          %v745 = vmul.f32 %v488, %v743
          %s746 = sld [smem:[#allocation12 + $0x2]]
          %v747 = vstv %s746
          %v748 = vmul.f32 %v487, %v747
          %v749 = vmul.f32 %v488, %v747
          %s750 = sld [smem:[#allocation6 + $0x82]]
          %v751 = vstv %s750
          %v752 = vmul.f32 %v490, %v751
          %v753 = vmul.f32 %v491, %v751
          %v754 = vadd.f32 %v740, %v752
          %v755 = vadd.f32 %v741, %v753
          %s756 = sld [smem:[#allocation9 + $0x82]]
          %v757 = vstv %s756
          %v758 = vmul.f32 %v490, %v757
          %v759 = vmul.f32 %v491, %v757
          %v760 = vadd.f32 %v744, %v758
          %v761 = vadd.f32 %v745, %v759
          %s762 = sld [smem:[#allocation12 + $0x82]]
          %v763 = vstv %s762
          %v764 = vmul.f32 %v490, %v763
          %v765 = vmul.f32 %v491, %v763
          %v766 = vadd.f32 %v748, %v764
          %v767 = vadd.f32 %v749, %v765
          %s768 = sld [smem:[#allocation6 + $0x102]]
          %v769 = vstv %s768
          %v770 = vmul.f32 %v493, %v769
          %v771 = vmul.f32 %v494, %v769
          %v772 = vadd.f32 %v754, %v770
          %v773 = vadd.f32 %v755, %v771
          %s774 = sld [smem:[#allocation9 + $0x102]]
          %v775 = vstv %s774
          %v776 = vmul.f32 %v493, %v775
          %v777 = vmul.f32 %v494, %v775
          %v778 = vadd.f32 %v760, %v776
          %v779 = vadd.f32 %v761, %v777
          %s780 = sld [smem:[#allocation12 + $0x102]]
          %v781 = vstv %s780
          %v782 = vmul.f32 %v493, %v781
          %v783 = vmul.f32 %v494, %v781
          %v784 = vadd.f32 %v766, %v782
          %v785 = vadd.f32 %v767, %v783
          %s786 = sld [smem:[#allocation6 + $0x182]]
          %v787 = vstv %s786
          %v788 = vmul.f32 %v496, %v787
          %v789 = vmul.f32 %v497, %v787
          %v790 = vadd.f32 %v772, %v788
          %v791 = vadd.f32 %v773, %v789
          %s792 = sld [smem:[#allocation9 + $0x182]]
          %v793 = vstv %s792
          %v794 = vmul.f32 %v496, %v793
          %v795 = vmul.f32 %v497, %v793
          %v796 = vadd.f32 %v778, %v794
          %v797 = vadd.f32 %v779, %v795
          %s798 = sld [smem:[#allocation12 + $0x182]]
          %v799 = vstv %s798
          %v800 = vmul.f32 %v496, %v799
          %v801 = vmul.f32 %v497, %v799
          %v802 = vadd.f32 %v784, %v800
          %v803 = vadd.f32 %v785, %v801
          %s804 = sld [smem:[#allocation7 + $0x2]]
          %v805 = vstv %s804
          %v806 = vadd.f32 %v790, %v805
          %v807 = vadd.f32 %v791, %v805
          %s808 = sld [smem:[#allocation10 + $0x2]]
          %v809 = vstv %s808
          %v810 = vadd.f32 %v796, %v809
          %v811 = vadd.f32 %v797, %v809
          %s812 = sld [smem:[#allocation13 + $0x2]]
          %v813 = vstv %s812
          %v814 = vadd.f32 %v802, %v813
          %v815 = vadd.f32 %v803, %v813
          %v816 = vxor.u32 %v806, 2147483648
          %v817 = vxor.u32 %v807, 2147483648
          %v818 = vmul.f32 %v816, 1.442695
          %v819 = vpow.pop %v818
          %v820 = vmul.f32 %v817, 1.442695
          %v821 = vpow.pop %v820
          %v822 = vadd.f32 %v819, 1.0
          %v823 = vadd.f32 %v821, 1.0
          %v824 = vrcp.pop %v822
          %v825 = vmul.f32 %v822, %v824
          %v826 = vsub.f32 1.0, %v825
          %v827 = vmul.f32 %v824, %v826
          %v828 = vadd.f32 %v824, %v827
          %vm829 = vweird.f32 %v822
          %vm830 = vweird.f32 %v824
          %vm831 = vmor %vm829, %vm830
          %v832 = vsel %vm831, %v824, %v828
          %v833 = vand.u32 2147483647, %v822
          %vm834 = vcmp.eq.f32.partialorder %v833, 8.507059e+37
          %v835 = vand.u32 %v822, 2147483648
          %v836 = vor.u32 1.1754944e-38, %v835
          %v837 = vsel %vm834, %v836, %v832
          %v838 = vmul.f32 1.0, %v837
          %v839 = vrcp.pop %v823
          %v840 = vmul.f32 %v823, %v839
          %v841 = vsub.f32 1.0, %v840
          %v842 = vmul.f32 %v839, %v841
          %v843 = vadd.f32 %v839, %v842
          %vm844 = vweird.f32 %v823
          %vm845 = vweird.f32 %v839
          %vm846 = vmor %vm844, %vm845
          %v847 = vsel %vm846, %v839, %v843
          %v848 = vand.u32 2147483647, %v823
          %vm849 = vcmp.eq.f32.partialorder %v848, 8.507059e+37
          %v850 = vand.u32 %v823, 2147483648
          %v851 = vor.u32 1.1754944e-38, %v850
          %v852 = vsel %vm849, %v851, %v847
          %v853 = vmul.f32 1.0, %v852
          %v854 = vmul.f32 %v838, %v814
          %v855 = vmul.f32 %v853, %v815
          %v856 = vadd.f32 %v810, %v854
          %v857 = vadd.f32 %v811, %v855
          %v858 = vld [vmem:[%s8] sm:$0xff]
          %v859 = vld [vmem:[%s8 + $0x8] sm:$0xff]
          %vm860 = vcmask 130048
          %v862 = vsel %vm860, %v616, 0
          %v865 = vsel %vm860, %v617, 0
          %v868 = vsel %vm860, %v736, 0
          %v871 = vsel %vm860, %v737, 0
          %v874 = vsel %vm860, %v856, 0
          %v877 = vsel %vm860, %v857, 0
          %879 = vmatpush.msra.mxu0 0.0
          %880 = vmatpush.msra.mxu0 0.0
          %881 = vmatpush.msra.mxu0 0.0
          %882 = vmatpush.msra.mxu0 0.0
          %883 = vmatpush.msra.mxu0 0.0
          %884 = vmatpush.msra.mxu0 0.0
          %885 = vmatpush.msra.mxu0 0.0
          %886 = vmatpush.msra.mxu0 0.0
          %887 = vmatpush.msra.mxu0 0.0
          %888 = vmatpush.msra.mxu0 0.0
          %889 = vmatpush.msra.mxu0 0.0
          %890 = vmatpush.msra.mxu0 0.0
          %891 = vmatpush.msra.mxu0 0.0
          %892 = vmatpush.msra.mxu0 0.0
          %893 = vmatpush.msra.mxu0 %v859
          %894 = vmatpush.msra.mxu0 %v858
          %895 = vmatmul.f32.gmra.mxu0 %v862
          %v896 = vpop.f32.mrf.mxu0
          %v897 = vadd.f32 0.0, %v896
          %898 = vmatmul.f32.gmra.mxu0 %v865
          %v899 = vpop.f32.mrf.mxu0
          %v900 = vadd.f32 0.0, %v899
          %901 = vmatmul.f32.gmra.mxu0 %v868
          %v902 = vpop.f32.mrf.mxu0
          %v903 = vadd.f32 0.0, %v902
          %904 = vmatmul.f32.gmra.mxu0 %v871
          %v905 = vpop.f32.mrf.mxu0
          %v906 = vadd.f32 0.0, %v905
          %907 = vmatmul.f32.gmra.mxu0 %v874
          %v908 = vpop.f32.mrf.mxu0
          %v909 = vadd.f32 0.0, %v908
          %910 = vmatmul.f32.gmra.mxu0 %v877
          %v911 = vpop.f32.mrf.mxu0
          %v912 = vadd.f32 0.0, %v911
          %913 = vdwg.mxu0
          %vm914 = vcmask 523264
          %915 = vst.msk [vmem:[#allocation2] sm:$0xff] %vm914, %v897
          %916 = vst.msk [vmem:[#allocation2 + $0x10] sm:$0xff] %vm914, %v900
          %919 = vrot.lane.b32.xlu0 %v903, 64
          %v920 = vpop.permute.xlu0 %919
          %921 = vrot.lane.b32.xlu0 %v906, 64
          %v922 = vpop.permute.xlu0 %921
          %vm925 = vcmask 1048064
          %926 = vst.msk [vmem:[#allocation2] sm:$0xff] %vm925, %v920
          %927 = vst.msk [vmem:[#allocation2 + $0x10] sm:$0xff] %vm925, %v922
          %928 = vst.msk [vmem:[#allocation2 + $0x8] sm:$0xff] %vm914, %v909
          %929 = vst.msk [vmem:[#allocation2 + $0x18] sm:$0xff] %vm914, %v912
        $region92: #{ra_forward.1} parent=55 // pred_fallthru
          _
        %v930 = vld [vmem:[#allocation15] sm:$0xff]
        %v931 = vld [vmem:[#allocation15 + $0x8] sm:$0xff]
        %v932 = vld [vmem:[#allocation15 + $0x10] sm:$0xff]
        %v933 = vld [vmem:[#allocation15 + $0x18] sm:$0xff]
        %v934 = vld [vmem:[#allocation15 + $0x20] sm:$0xff]
        %v935 = vld [vmem:[#allocation15 + $0x28] sm:$0xff]
        %v936 = vld [vmem:[#allocation15 + $0x30] sm:$0xff]
        %v937 = vld [vmem:[#allocation15 + $0x38] sm:$0xff]
        %v938 = vld [vmem:[#allocation2] sm:$0xff]
        %v939 = vld [vmem:[#allocation2 + $0x8] sm:$0xff]
        %v940 = vld [vmem:[#allocation2 + $0x10] sm:$0xff]
        %v941 = vld [vmem:[#allocation2 + $0x18] sm:$0xff]
        %vm942 = vcmask 130048
        %v944 = vsel %vm942, %v930, 0
        %v947 = vsel %vm942, %v931, 0
        %v950 = vsel %vm942, %v932, 0
        %v953 = vsel %vm942, %v933, 0
        %v956 = vsel %vm942, %v934, 0
        %v959 = vsel %vm942, %v935, 0
        %v962 = vsel %vm942, %v936, 0
        %v965 = vsel %vm942, %v937, 0
        %967 = vmatpush.msra.mxu0 0.0
        %968 = vmatpush.msra.mxu0 0.0
        %969 = vmatpush.msra.mxu0 0.0
        %970 = vmatpush.msra.mxu0 0.0
        %971 = vmatpush.msra.mxu0 0.0
        %972 = vmatpush.msra.mxu0 0.0
        %973 = vmatpush.msra.mxu0 0.0
        %974 = vmatpush.msra.mxu0 0.0
        %975 = vmatpush.msra.mxu0 0.0
        %976 = vmatpush.msra.mxu0 0.0
        %977 = vmatpush.msra.mxu0 0.0
        %978 = vmatpush.msra.mxu0 0.0
        %979 = vmatpush.msra.mxu0 0.0
        %980 = vmatpush.msra.mxu0 0.0
        %981 = vmatpush.msra.mxu0 %v940
        %982 = vmatpush.msra.mxu0 %v938
        %983 = vmatmul.f32.gmra.mxu0 %v944
        %v984 = vpop.f32.mrf.mxu0
        %v985 = vadd.f32 0.0, %v984
        %986 = vmatmul.f32.gmra.mxu0 %v947
        %v987 = vpop.f32.mrf.mxu0
        %v988 = vadd.f32 0.0, %v987
        %989 = vmatmul.f32.gmra.mxu0 %v950
        %v990 = vpop.f32.mrf.mxu0
        %v991 = vadd.f32 0.0, %v990
        %992 = vmatmul.f32.gmra.mxu0 %v953
        %v993 = vpop.f32.mrf.mxu0
        %v994 = vadd.f32 0.0, %v993
        %995 = vmatmul.f32.gmra.mxu0 %v956
        %v996 = vpop.f32.mrf.mxu0
        %v997 = vadd.f32 0.0, %v996
        %998 = vmatmul.f32.gmra.mxu0 %v959
        %v999 = vpop.f32.mrf.mxu0
        %v1000 = vadd.f32 0.0, %v999
        %1001 = vmatmul.f32.gmra.mxu0 %v962
        %v1002 = vpop.f32.mrf.mxu0
        %v1003 = vadd.f32 0.0, %v1002
        %1004 = vmatmul.f32.gmra.mxu0 %v965
        %v1005 = vpop.f32.mrf.mxu0
        %v1006 = vadd.f32 0.0, %v1005
        %1007 = vdwg.mxu0
        %1008 = vmatpush.msra.mxu0 0.0
        %1009 = vmatpush.msra.mxu0 0.0
        %1010 = vmatpush.msra.mxu0 0.0
        %1011 = vmatpush.msra.mxu0 0.0
        %1012 = vmatpush.msra.mxu0 0.0
        %1013 = vmatpush.msra.mxu0 0.0
        %1014 = vmatpush.msra.mxu0 0.0
        %1015 = vmatpush.msra.mxu0 0.0
        %1016 = vmatpush.msra.mxu0 0.0
        %1017 = vmatpush.msra.mxu0 0.0
        %1018 = vmatpush.msra.mxu0 0.0
        %1019 = vmatpush.msra.mxu0 0.0
        %1020 = vmatpush.msra.mxu0 0.0
        %1021 = vmatpush.msra.mxu0 0.0
        %1022 = vmatpush.msra.mxu0 %v941
        %1023 = vmatpush.msra.mxu0 %v939
        %1024 = vmatmul.f32.gmra.mxu0 %v944
        %v1025 = vpop.f32.mrf.mxu0
        %v1026 = vadd.f32 0.0, %v1025
        %1027 = vmatmul.f32.gmra.mxu0 %v947
        %v1028 = vpop.f32.mrf.mxu0
        %v1029 = vadd.f32 0.0, %v1028
        %1030 = vmatmul.f32.gmra.mxu0 %v950
        %v1031 = vpop.f32.mrf.mxu0
        %v1032 = vadd.f32 0.0, %v1031
        %1033 = vmatmul.f32.gmra.mxu0 %v953
        %v1034 = vpop.f32.mrf.mxu0
        %v1035 = vadd.f32 0.0, %v1034
        %1036 = vmatmul.f32.gmra.mxu0 %v956
        %v1037 = vpop.f32.mrf.mxu0
        %v1038 = vadd.f32 0.0, %v1037
        %1039 = vmatmul.f32.gmra.mxu0 %v959
        %v1040 = vpop.f32.mrf.mxu0
        %v1041 = vadd.f32 0.0, %v1040
        %1042 = vmatmul.f32.gmra.mxu0 %v962
        %v1043 = vpop.f32.mrf.mxu0
        %v1044 = vadd.f32 0.0, %v1043
        %1045 = vmatmul.f32.gmra.mxu0 %v965
        %v1046 = vpop.f32.mrf.mxu0
        %v1047 = vadd.f32 0.0, %v1046
        %1048 = vdwg.mxu0
        %1049 = vst [vmem:[%s481] sm:$0xff] %v985
        %vm1050 = vcmask 523264
        %1051 = vst.msk [vmem:[%s481 + $0x8] sm:$0xff] %vm1050, %v1026
        %1052 = vst [vmem:[%s481 + $0x10] sm:$0xff] %v988
        %1053 = vst.msk [vmem:[%s481 + $0x18] sm:$0xff] %vm1050, %v1029
        %1054 = vst [vmem:[%s481 + $0x20] sm:$0xff] %v991
        %1055 = vst.msk [vmem:[%s481 + $0x28] sm:$0xff] %vm1050, %v1032
        %1056 = vst [vmem:[%s481 + $0x30] sm:$0xff] %v994
        %1057 = vst.msk [vmem:[%s481 + $0x38] sm:$0xff] %vm1050, %v1035
        %1058 = vst [vmem:[%s481 + $0x40] sm:$0xff] %v997
        %1059 = vst.msk [vmem:[%s481 + $0x48] sm:$0xff] %vm1050, %v1038
        %1060 = vst [vmem:[%s481 + $0x50] sm:$0xff] %v1000
        %1061 = vst.msk [vmem:[%s481 + $0x58] sm:$0xff] %vm1050, %v1041
        %1062 = vst [vmem:[%s481 + $0x60] sm:$0xff] %v1003
        %1063 = vst.msk [vmem:[%s481 + $0x68] sm:$0xff] %vm1050, %v1044
        %1064 = vst [vmem:[%s481 + $0x70] sm:$0xff] %v1006
        %1065 = vst.msk [vmem:[%s481 + $0x78] sm:$0xff] %vm1050, %v1047
        %s1066 = smul.u32 8, %s33
        %p1067 = scmp.lt.s32.totalorder %s32, 1
        %s1068 = scalar_select %p1067, %s32, 1
        %p1069 = scmp.lt.s32.totalorder %s1066, 7
        %s1070 = scalar_select %p1069, %s1066, 7
        %s1071 = smul.addr %s1070, 2
        %s1072 = smul.addr %s1068, 16
        %s1073 = sadd.s32 %s1071, %s1072
        %s1074 = smul.addr %s1073, 8
        %s1075 = scalar_lea.vmem %s9, %s1074
        // Predicated region
        $region93: #{ra_forward.1} parent=55 // pred_check
          %p1076 = pneg %p259
        $region94: #{ra_forward.1} parent=55 // pred_check_branch
          %1078 = sbr.rel (%p1076) target = $region96
        $region95: #{ra_forward.1} parent=55 // pred_region
          %s1079 = smul.u32 8, %s33
        $region96: #{ra_forward.1} parent=55 // pred_fallthru
          _
      $region56: #{ra_forward.1} parent=5 // pred_fallthru
        _
      %p1080 = scmp.le.s32.totalorder 2, %s23
      // Predicated region
      $region97: #{ra_forward.1} parent=5 // pred_check
        %p1081 = pneg %p1080
      $region98: #{ra_forward.1} parent=5 // pred_check_branch
        %1083 = sbr.rel (%p1081) target = $region100
      $region99: #{ra_forward.1} parent=5 // pred_region
        %s1084 = ssub.s32 %s23, 2
        // Predicated region
        $region101: #{ra_forward.1} parent=99 // pred_check
          %p1085 = pneg %p265
        $region102: #{ra_forward.1} parent=99 // pred_check_branch
          %1087 = sbr.rel (%p1085) target = $region104
        $region103: #{ra_forward.1} parent=99 // pred_region
          %s1088 = smul.u32 8, %s35
          %p1089 = scmp.lt.s32.totalorder %s34, 1
          %s1090 = scalar_select %p1089, %s34, 1
          %p1091 = scmp.lt.s32.totalorder %s1088, 7
          %s1092 = scalar_select %p1091, %s1088, 7
          %s1093 = smul.addr %s1092, 2
          %s1094 = smul.addr %s1090, 16
          %s1095 = sadd.s32 %s1093, %s1094
          %s1096 = smul.addr %s1095, 8
          %s1097 = scalar_lea.vmem %s9, %s1096
        $region104: #{ra_forward.1} parent=99 // pred_fallthru
          _
      $region100: #{ra_forward.1} parent=5 // pred_fallthru
        _
    $region6: #{ra_forward.1} parent=1 // loop_footer
      %s27 = sadd.s32 1, %s23
    $region7: #{ra_forward.1} parent=1 // loop_footer_branch
      %22 = sbr.rel target = $region3
    $region8: #{ra_forward.1} parent=1 // loop_exit
      _
    %1098 = vsyncpa [#allocation4], 1
    %s1099 = scalar_lea.sflag [#allocation4], 1
    %1100 = vsyncpa %s1099, 1
    %1101 = vsyncpa [#allocation16], 1
    %1102 = vsyncpa [#allocation5], 1
    %s1103 = scalar_lea.sflag [#allocation5], 1
    %1104 = vsyncpa %s1103, 1
    %1105 = vsyncpa [#allocation8], 1
    %1106 = vsyncpa [#allocation11], 1
    %1107 = vsyncpa [#allocation14], 1

</llo_original>
